<compile_context>
chip_gen: v5e
topology: v5e:2x2
jax: 0.10.0
libtpu: 0.0.40
codegen_flags: <defaults>
</compile_context>

<pallas_src>
import functools

import jax
import jax.numpy as jnp
from jax.experimental import pallas as pl
from jax.experimental.pallas import tpu as pltpu


def _hint8(idx, static_step):
    """Alignment hint for a dynamic pl.ds start known to be a multiple of static_step."""
    return pl.multiple_of(idx, 8) if static_step % 8 == 0 else idx


# ----------------------------- fused Pallas kernel -----------------------------

def _fused_inverted_residual_kernel(*refs, w, th_in, stride, use_res, has_expand):
    """One (image, row-tile) step: 1x1 expand + BN + ReLU6 -> 3x3 depthwise
    (stride 1/2) + BN + ReLU6 -> 1x1 project + BN (+ residual).
    BN scale is pre-folded into the weights; only biases are added here."""
    if has_expand:
        (x_ref, w1_ref, b1_ref, wdw_ref, bdw_ref, w2_ref, b2_ref,
         o_ref, pad_ref) = refs
    else:
        (x_ref, wdw_ref, bdw_ref, w2_ref, b2_ref, o_ref, pad_ref) = refs

    hid = wdw_ref.shape[2]
    tho = th_in // stride                       # output rows produced this step
    wo = w // stride                            # output cols
    r = pl.program_id(1)
    last = pl.num_programs(1) - 1
    row_elems = th_in * w
    body_start = _hint8(r * row_elems, row_elems)

    def expand_rows(flat_start, n_rows):
        """1x1 expand + folded BN + ReLU6 on n_rows*w flattened positions."""
        xr = x_ref[0, pl.ds(flat_start, n_rows * w), :]            # bf16
        if has_expand:
            yr = jnp.dot(xr, w1_ref[...], preferred_element_type=jnp.float32)
            yr = jnp.clip(yr + b1_ref[...], 0.0, 6.0)
        else:
            yr = xr                                                # hid == cin
        return xr, yr.astype(pad_ref.dtype).reshape(n_rows, w, hid)

    # ---- halo: zero only the 1-px border strips (interior is fully
    # overwritten every step, so no full-scratch zero-fill). ----
    zcol = jnp.zeros((th_in + 2, 1, hid), pad_ref.dtype)
    pad_ref[pl.ds(0, th_in + 2), pl.ds(0, 1), :] = zcol
    pad_ref[pl.ds(0, th_in + 2), pl.ds(w + 1, 1), :] = zcol

    # ---- interior rows: expand into the VMEM pad scratch ----
    xb, y1 = expand_rows(body_start, th_in)
    pad_ref[pl.ds(1, th_in), pl.ds(1, w), :] = y1

    # ---- top/bottom halo rows: zero at the image border, else recompute the
    # expand of the neighbouring input row (keeps row tiles independent). ----
    zrow = jnp.zeros((1, w, hid), pad_ref.dtype)

    @pl.when(r == 0)
    def _():
        pad_ref[pl.ds(0, 1), pl.ds(1, w), :] = zrow

    @pl.when(r > 0)
    def _():
        _, yt = expand_rows(_hint8(body_start - w, w), 1)
        pad_ref[pl.ds(0, 1), pl.ds(1, w), :] = yt

    if stride == 1:              # stride-2 taps never read the bottom halo row
        @pl.when(r == last)
        def _():
            pad_ref[pl.ds(th_in + 1, 1), pl.ds(1, w), :] = zrow

        @pl.when(r < last)
        def _():
            _, yb = expand_rows(_hint8(body_start + row_elems, w), 1)
            pad_ref[pl.ds(th_in + 1, 1), pl.ds(1, w), :] = yb

    # ---- 3x3 depthwise conv (stride folded into the reads) + BN + ReLU6 ----
    # TODO(synk): for stride=2, deinterleave even/odd columns at write time so
    # all 9 taps become dense sublane reads and the bf16 scratch applies too.
    wdw = wdw_ref[...]                                             # (3,3,hid) f32
    acc = jnp.zeros((tho, wo, hid), jnp.float32)
    for kh in range(3):
        for kw in range(3):
            if stride == 1:
                patch = pad_ref[pl.ds(kh, tho), pl.ds(kw, wo), :]
            else:
                patch = pad_ref[pl.ds(kh, tho, stride), pl.ds(kw, wo, stride), :]
            acc = acc + patch.astype(jnp.float32) * wdw[kh, kw, :]
    ydw = jnp.clip(acc + bdw_ref[...], 0.0, 6.0)                   # f32

    # ---- 1x1 project + folded BN (+ residual), lane-dense store ----
    yf = ydw.reshape(tho * wo, hid).astype(jnp.bfloat16)
    y2 = jnp.dot(yf, w2_ref[...], preferred_element_type=jnp.float32)
    y2 = y2 + b2_ref[...]                                          # (tho*wo, oup)
    if use_res:
        y2 = y2 + xb.astype(jnp.float32)        # stride==1 and cin==oup
    # Channels-major (flattened NCHW): output lane dim is tho*wo >= 128, so the
    # store is an unmasked vst and the wrapper needs no NHWC->NCHW transpose.
    o_ref[...] = y2.T[None].astype(o_ref.dtype)


# ----------------------------- wrapper -----------------------------

def _pick_row_tile(ho, wo, stride, w, hidden, pad_itemsize, row_tile_out):
    """Output rows per grid step.  The out block's lane dim (tho*wo) must be a
    multiple of 128 (or the full ho*wo)."""
    cands = [t for t in range(1, ho + 1)
             if ho % t == 0 and (t == ho or (t * wo) % 128 == 0)]
    if row_tile_out is not None:
        tho = row_tile_out
    else:
        budget = 8 * 1024 * 1024      # keep the padded-hidden scratch modest
        fitting = [t for t in cands
                   if (t * stride + 2) * (w + 2) * hidden * pad_itemsize <= budget]
        tho = max(fitting) if fitting else min(cands)
    assert tho in cands, (tho, ho, wo)
    return tho


def inverted_residual_pallas(x_cl, params, *, stride, expand_ratio,
                             out_dtype=jnp.float32, row_tile_out=None):
    """Fused InvertedResidual forward.

    x_cl: channels-last activations (N, H, W, Cin).
    Returns channels-FIRST output (N, Cout, H', W'): the kernel stores its
    result lane-dense in flattened-NCHW form, so no output transpose is
    needed.  Pass out_dtype=jnp.bfloat16 when the consumer takes bf16 to halve
    the output writeback bytes.
    """
    n, h, w, inp = x_cl.shape
    assert stride in (1, 2)
    if stride == 2:
        # TODO(synk): odd spatial sizes with stride 2 need a ragged last tile.
        assert h % 2 == 0 and w % 2 == 0, "stride-2 path assumes even H/W"
    hidden = int(round(inp * expand_ratio))
    oup = params["w2"].shape[1]
    has_expand = expand_ratio != 1
    use_res = (stride == 1 and inp == oup)
    ho, wo = h // stride, w // stride

    # bf16 hidden scratch for stride-1 (dense static-offset taps, f32 math);
    # f32 for the stride-2 strided-tap path.
    pad_dtype = jnp.bfloat16 if stride == 1 else jnp.float32
    tho = _pick_row_tile(ho, wo, stride, w, hidden,
                         jnp.dtype(pad_dtype).itemsize, row_tile_out)
    th_in = tho * stride
    n_row_tiles = ho // tho

    # Channels-last flattened activations, bf16 for DMA + MXU operands.
    x = x_cl.reshape(n, h * w, inp).astype(jnp.bfloat16)

    # Fold the (eval-mode) BN scales into the conv weights at trace time.
    args = [x]
    in_specs = [pl.BlockSpec((1, h * w, inp), lambda b, r: (b, 0, 0))]
    if has_expand:
        w1s = (params["w1"] * params["s1"][None, :]).astype(jnp.bfloat16)
        args += [w1s, params["b1"].reshape(1, hidden).astype(jnp.float32)]
        in_specs += [pl.BlockSpec((inp, hidden), lambda b, r: (0, 0)),
                     pl.BlockSpec((1, hidden), lambda b, r: (0, 0))]
    wdws = (params["w_dw"] * params["s_dw"]).astype(jnp.float32)
    w2s = (params["w2"] * params["s2"][None, :]).astype(jnp.bfloat16)
    args += [wdws, params["b_dw"].reshape(1, hidden).astype(jnp.float32),
             w2s, params["b2"].reshape(1, oup).astype(jnp.float32)]
    in_specs += [pl.BlockSpec((3, 3, hidden), lambda b, r: (0, 0, 0)),
                 pl.BlockSpec((1, hidden), lambda b, r: (0, 0)),
                 pl.BlockSpec((hidden, oup), lambda b, r: (0, 0)),
                 pl.BlockSpec((1, oup), lambda b, r: (0, 0))]

    kernel = functools.partial(
        _fused_inverted_residual_kernel, w=w, th_in=th_in, stride=stride,
        use_res=use_res, has_expand=has_expand)

    out = pl.pallas_call(
        kernel,
        out_shape=jax.ShapeDtypeStruct((n, oup, ho * wo), out_dtype),
        grid=(n, n_row_tiles),
        in_specs=in_specs,
        out_specs=pl.BlockSpec((1, oup, tho * wo), lambda b, r: (b, 0, r)),
        scratch_shapes=[pltpu.VMEM((th_in + 2, w + 2, hidden), pad_dtype)],
        compiler_params=pltpu.CompilerParams(
            dimension_semantics=("parallel", "parallel"),
            vmem_limit_bytes=48 * 1024 * 1024),
    )(*args)

    return out.reshape(n, oup, ho, wo)                    # NCHW, no transpose


def inverted_residual_nchw(x_nchw, params, *, stride, expand_ratio, **kw):
    """PyTorch-layout adapter: NCHW in -> NCHW out.
    TODO(synk): in a full network standardize one activation layout end-to-end
    so this input-side transpose disappears (the output side already needs no
    transpose)."""
    x_cl = jnp.transpose(x_nchw, (0, 2, 3, 1))
    return inverted_residual_pallas(x_cl, params, stride=stride,
                                    expand_ratio=expand_ratio, **kw)


# ----------------------------- reference (pure JAX, f32) -----------------------------

def inverted_residual_ref(x, params, *, stride, expand_ratio, inp, oup):
    dn = ("NCHW", "OIHW", "NCHW")
    hidden = int(round(inp * expand_ratio))
    h = x
    if expand_ratio != 1:
        w1 = params["w1"].T.reshape(hidden, inp, 1, 1)
        h = jax.lax.conv_general_dilated(h, w1, (1, 1), [(0, 0), (0, 0)],
                                         dimension_numbers=dn)
        h = h * params["s1"][None, :, None, None] + params["b1"][None, :, None, None]
        h = jnp.clip(h, 0.0, 6.0)
    w_dw = jnp.transpose(params["w_dw"], (2, 0, 1))[:, None, :, :]  # (hidden,1,3,3)
    h = jax.lax.conv_general_dilated(h, w_dw, (stride, stride), [(1, 1), (1, 1)],
                                     dimension_numbers=dn,
                                     feature_group_count=hidden)
    h = h * params["s_dw"][None, :, None, None] + params["b_dw"][None, :, None, None]
    h = jnp.clip(h, 0.0, 6.0)
    w2 = params["w2"].T.reshape(oup, hidden, 1, 1)
    h = jax.lax.conv_general_dilated(h, w2, (1, 1), [(0, 0), (0, 0)],
                                     dimension_numbers=dn)
    h = h * params["s2"][None, :, None, None] + params["b2"][None, :, None, None]
    if stride == 1 and inp == oup:
        h = x + h
    return h


# ----------------------------- deterministic params -----------------------------

def init_params(key, inp, oup, expand_ratio):
    hidden = int(round(inp * expand_ratio))
    ks = jax.random.split(key, 16)
    eps = 1e-5

    def bn(kg, kb, km, kv, c):
        gamma = jax.random.uniform(kg, (c,), minval=0.5, maxval=1.5)
        beta = jax.random.normal(kb, (c,)) * 0.1
        mean = jax.random.normal(km, (c,)) * 0.1
        var = jax.random.uniform(kv, (c,), minval=0.5, maxval=1.5)
        scale = gamma / jnp.sqrt(var + eps)
        bias = beta - mean * scale
        return scale.astype(jnp.float32), bias.astype(jnp.float32)

    params = {}
    if expand_ratio != 1:
        params["w1"] = (jax.random.normal(ks[0], (inp, hidden)) * 0.1).astype(jnp.float32)
        params["s1"], params["b1"] = bn(ks[1], ks[2], ks[3], ks[4], hidden)
    params["w_dw"] = (jax.random.normal(ks[5], (3, 3, hidden)) * 0.1).astype(jnp.float32)
    params["s_dw"], params["b_dw"] = bn(ks[6], ks[7], ks[8], ks[9], hidden)
    params["w2"] = (jax.random.normal(ks[10], (hidden, oup)) * 0.1).astype(jnp.float32)
    params["s2"], params["b2"] = bn(ks[11], ks[12], ks[13], ks[14], oup)
    return params


# ----------------------------- main -----------------------------

if __name__ == "__main__":
    key = jax.random.PRNGKey(0)
    kx, kp = jax.random.split(key)

    configs = [
        # expand + residual, 2 row tiles (halo-from-x path, bf16 hidden scratch)
        dict(inp=8, oup=8, stride=1, expand_ratio=4, hw=16, row_tile_out=8),
        # expand + stride-2 downsample, 2 row tiles (f32 scratch, strided taps)
        dict(inp=8, oup=16, stride=2, expand_ratio=4, hw=32, row_tile_out=8),
        # no expand + residual, auto row tile (single tile, zero halos)
        dict(inp=16, oup=16, stride=1, expand_ratio=1, hw=16, row_tile_out=None),
    ]

    for cfg in configs:
        hw = cfg["hw"]
        x = jax.random.normal(kx, (2, cfg["inp"], hw, hw), dtype=jnp.float32)
        # Snap the test input to the bf16 grid so the f32 reference and the
        # bf16-I/O Pallas path (incl. the residual read) see identical values.
        x = x.astype(jnp.bfloat16).astype(jnp.float32)
        params = init_params(kp, cfg["inp"], cfg["oup"], cfg["expand_ratio"])

        out = inverted_residual_nchw(x, params, stride=cfg["stride"],
                                     expand_ratio=cfg["expand_ratio"],
                                     row_tile_out=cfg["row_tile_out"])
        out = jax.block_until_ready(out)

        ref = inverted_residual_ref(x, params, stride=cfg["stride"],
                                    expand_ratio=cfg["expand_ratio"],
                                    inp=cfg["inp"], oup=cfg["oup"])
        assert out.shape == ref.shape, (out.shape, ref.shape)
        err = float(jnp.max(jnp.abs(out - ref)))
        # bf16 activations / 1x1 weights / hidden scratch (f32 accumulation)
        assert err < 5e-2, f"max abs error too large: {err}"

    print("KERNEL_OK")
</pallas_src>

<mosaic_0001>
module attributes {stable_mosaic.version = 11 : i64} {
  func.func @_fused_inverted_residual_kernel(%arg0: i32, %arg1: i32, %arg2: memref<1x256x8xbf16, #tpu.memory_space<vmem>>, %arg3: memref<8x32xbf16, #tpu.memory_space<vmem>>, %arg4: memref<1x32xf32, #tpu.memory_space<vmem>>, %arg5: memref<3x3x32xf32, #tpu.memory_space<vmem>>, %arg6: memref<1x32xf32, #tpu.memory_space<vmem>>, %arg7: memref<32x8xbf16, #tpu.memory_space<vmem>>, %arg8: memref<1x8xf32, #tpu.memory_space<vmem>>, %arg9: memref<1x8x128xf32, #tpu.memory_space<vmem>>, %arg10: memref<10x18x32xbf16, #tpu.memory_space<vmem>>) attributes {dimension_semantics = [#tpu.dimension_semantics<parallel>, #tpu.dimension_semantics<parallel>], iteration_bounds = array<i64: 2, 2>, scalar_prefetch = 0 : i64, scratch_operands = 1 : i64, tpu.core_type = #tpu.core_type<tc>, window_params = [{transform_indices = @transform_0, window_bounds = array<i64: 1, 256, 8>}, {pipeline_mode = #tpu.pipeline_mode<synchronous>, transform_indices = @transform_1, window_bounds = array<i64: 8, 32>}, {pipeline_mode = #tpu.pipeline_mode<synchronous>, transform_indices = @transform_2, window_bounds = array<i64: 1, 32>}, {pipeline_mode = #tpu.pipeline_mode<synchronous>, transform_indices = @transform_3, window_bounds = array<i64: 3, 3, 32>}, {pipeline_mode = #tpu.pipeline_mode<synchronous>, transform_indices = @transform_4, window_bounds = array<i64: 1, 32>}, {pipeline_mode = #tpu.pipeline_mode<synchronous>, transform_indices = @transform_5, window_bounds = array<i64: 32, 8>}, {pipeline_mode = #tpu.pipeline_mode<synchronous>, transform_indices = @transform_6, window_bounds = array<i64: 1, 8>}, {transform_indices = @transform_7, window_bounds = array<i64: 1, 8, 128>}]} {
    %c128_i32 = arith.constant 128 : i32
    %0 = arith.muli %arg1, %c128_i32 : i32
    %1 = tpu.assume_multiple %0, 8 : i32
    %cst = arith.constant 0.000000e+00 : bf16
    %2 = vector.broadcast %cst : bf16 to vector<10x1x32xbf16>
    %c0 = arith.constant 0 : index
    %c0_0 = arith.constant 0 : index
    %c0_1 = arith.constant 0 : index
    %3 = vector.load %arg10[%c0, %c0_0, %c0_1] : memref<10x18x32xbf16, #tpu.memory_space<vmem>>, vector<10x1x32xbf16>
    tpu.vector_store %arg10[%c0, %c0_0, %c0_1], %2 {strides = array<i32>} : memref<10x18x32xbf16, #tpu.memory_space<vmem>>, vector<10x1x32xbf16>,
    %c0_2 = arith.constant 0 : index
    %c17 = arith.constant 17 : index
    %c0_3 = arith.constant 0 : index
    %4 = vector.load %arg10[%c0_2, %c17, %c0_3] : memref<10x18x32xbf16, #tpu.memory_space<vmem>>, vector<10x1x32xbf16>
    tpu.vector_store %arg10[%c0_2, %c17, %c0_3], %2 {strides = array<i32>} : memref<10x18x32xbf16, #tpu.memory_space<vmem>>, vector<10x1x32xbf16>,
    %c0_4 = arith.constant 0 : index
    %5 = arith.index_cast %1 : i32 to index
    %c0_5 = arith.constant 0 : index
    %6 = vector.load %arg2[%c0_4, %5, %c0_5] : memref<1x256x8xbf16, #tpu.memory_space<vmem>>, vector<1x128x8xbf16>
    %7 = vector.shape_cast %6 : vector<1x128x8xbf16> to vector<128x8xbf16>
    %c0_6 = arith.constant 0 : index
    %c0_7 = arith.constant 0 : index
    %8 = vector.load %arg3[%c0_6, %c0_7] : memref<8x32xbf16, #tpu.memory_space<vmem>>, vector<8x32xbf16>
    %cst_8 = arith.constant dense<0.000000e+00> : vector<128x32xf32>
    %9 = tpu.matmul %7, %8, %cst_8 {dimension_numbers = #tpu.dot_dimension_numbers<[1], [0], [0], [1], [0, 0, 1, 1], [], []>} : vector<128x8xbf16>, vector<8x32xbf16>, vector<128x32xf32> -> vector<128x32xf32>
    %c0_9 = arith.constant 0 : index
    %c0_10 = arith.constant 0 : index
    %10 = vector.load %arg4[%c0_9, %c0_10] : memref<1x32xf32, #tpu.memory_space<vmem>>, vector<1x32xf32>
    %11 = vector.broadcast %10 : vector<1x32xf32> to vector<128x32xf32>
    %12 = arith.addf %9, %11 : vector<128x32xf32>
    %cst_11 = arith.constant 0.000000e+00 : f32
    %cst_12 = arith.constant 6.000000e+00 : f32
    %13 = vector.broadcast %cst_11 : f32 to vector<128x32xf32>
    %14 = arith.maximumf %13, %12 : vector<128x32xf32>
    %15 = vector.broadcast %cst_12 : f32 to vector<128x32xf32>
    %16 = arith.minimumf %15, %14 : vector<128x32xf32>
    %17 = arith.truncf %16 : vector<128x32xf32> to vector<128x32xbf16>
    %18 = vector.shape_cast %17 : vector<128x32xbf16> to vector<8x16x32xbf16>
    %c1 = arith.constant 1 : index
    %c1_13 = arith.constant 1 : index
    %c0_14 = arith.constant 0 : index
    %19 = vector.load %arg10[%c1, %c1_13, %c0_14] : memref<10x18x32xbf16, #tpu.memory_space<vmem>>, vector<8x16x32xbf16>
    tpu.vector_store %arg10[%c1, %c1_13, %c0_14], %18 {strides = array<i32>} : memref<10x18x32xbf16, #tpu.memory_space<vmem>>, vector<8x16x32xbf16>,
    %cst_15 = arith.constant 0.000000e+00 : bf16
    %20 = vector.broadcast %cst_15 : bf16 to vector<1x16x32xbf16>
    %c0_i32 = arith.constant 0 : i32
    %21 = arith.cmpi eq, %arg1, %c0_i32 : i32
    %22 = arith.extui %21 : i1 to i32
    %c0_i32_16 = arith.constant 0 : i32
    %23 = arith.cmpi ne, %22, %c0_i32_16 : i32
    scf.if %23 {
      %c0_64 = arith.constant 0 : index
      %c1_65 = arith.constant 1 : index
      %c0_66 = arith.constant 0 : index
      %127 = vector.load %arg10[%c0_64, %c1_65, %c0_66] : memref<10x18x32xbf16, #tpu.memory_space<vmem>>, vector<1x16x32xbf16>
      tpu.vector_store %arg10[%c0_64, %c1_65, %c0_66], %20 {strides = array<i32>} : memref<10x18x32xbf16, #tpu.memory_space<vmem>>, vector<1x16x32xbf16>,
    } else {
    }
    %c0_i32_17 = arith.constant 0 : i32
    %24 = arith.cmpi sgt, %arg1, %c0_i32_17 : i32
    %25 = arith.extui %24 : i1 to i32
    %c0_i32_18 = arith.constant 0 : i32
    %26 = arith.cmpi ne, %25, %c0_i32_18 : i32
    scf.if %26 {
      %c16_i32 = arith.constant 16 : i32
      %127 = arith.subi %1, %c16_i32 : i32
      %128 = tpu.assume_multiple %127, 8 : i32
      %c0_64 = arith.constant 0 : index
      %129 = arith.index_cast %128 : i32 to index
      %c0_65 = arith.constant 0 : index
      %130 = vector.load %arg2[%c0_64, %129, %c0_65] : memref<1x256x8xbf16, #tpu.memory_space<vmem>>, vector<1x16x8xbf16>
      %131 = vector.shape_cast %130 : vector<1x16x8xbf16> to vector<16x8xbf16>
      %c0_66 = arith.constant 0 : index
      %c0_67 = arith.constant 0 : index
      %132 = vector.load %arg3[%c0_66, %c0_67] : memref<8x32xbf16, #tpu.memory_space<vmem>>, vector<8x32xbf16>
      %cst_68 = arith.constant dense<0.000000e+00> : vector<16x32xf32>
      %133 = tpu.matmul %131, %132, %cst_68 {dimension_numbers = #tpu.dot_dimension_numbers<[1], [0], [0], [1], [0, 0, 1, 1], [], []>} : vector<16x8xbf16>, vector<8x32xbf16>, vector<16x32xf32> -> vector<16x32xf32>
      %c0_69 = arith.constant 0 : index
      %c0_70 = arith.constant 0 : index
      %134 = vector.load %arg4[%c0_69, %c0_70] : memref<1x32xf32, #tpu.memory_space<vmem>>, vector<1x32xf32>
      %135 = vector.broadcast %134 : vector<1x32xf32> to vector<16x32xf32>
      %136 = arith.addf %133, %135 : vector<16x32xf32>
      %cst_71 = arith.constant 0.000000e+00 : f32
      %cst_72 = arith.constant 6.000000e+00 : f32
      %137 = vector.broadcast %cst_71 : f32 to vector<16x32xf32>
      %138 = arith.maximumf %137, %136 : vector<16x32xf32>
      %139 = vector.broadcast %cst_72 : f32 to vector<16x32xf32>
      %140 = arith.minimumf %139, %138 : vector<16x32xf32>
      %141 = arith.truncf %140 : vector<16x32xf32> to vector<16x32xbf16>
      %142 = vector.shape_cast %141 : vector<16x32xbf16> to vector<1x16x32xbf16>
      %c0_73 = arith.constant 0 : index
      %c1_74 = arith.constant 1 : index
      %c0_75 = arith.constant 0 : index
      %143 = vector.load %arg10[%c0_73, %c1_74, %c0_75] : memref<10x18x32xbf16, #tpu.memory_space<vmem>>, vector<1x16x32xbf16>
      tpu.vector_store %arg10[%c0_73, %c1_74, %c0_75], %142 {strides = array<i32>} : memref<10x18x32xbf16, #tpu.memory_space<vmem>>, vector<1x16x32xbf16>,
    } else {
    }
    %c1_i32 = arith.constant 1 : i32
    %27 = arith.cmpi eq, %arg1, %c1_i32 : i32
    %28 = arith.extui %27 : i1 to i32
    %c0_i32_19 = arith.constant 0 : i32
    %29 = arith.cmpi ne, %28, %c0_i32_19 : i32
    scf.if %29 {
      %c9 = arith.constant 9 : index
      %c1_64 = arith.constant 1 : index
      %c0_65 = arith.constant 0 : index
      %127 = vector.load %arg10[%c9, %c1_64, %c0_65] : memref<10x18x32xbf16, #tpu.memory_space<vmem>>, vector<1x16x32xbf16>
      tpu.vector_store %arg10[%c9, %c1_64, %c0_65], %20 {strides = array<i32>} : memref<10x18x32xbf16, #tpu.memory_space<vmem>>, vector<1x16x32xbf16>,
    } else {
    }
    %c1_i32_20 = arith.constant 1 : i32
    %30 = arith.cmpi slt, %arg1, %c1_i32_20 : i32
    %31 = arith.extui %30 : i1 to i32
    %c0_i32_21 = arith.constant 0 : i32
    %32 = arith.cmpi ne, %31, %c0_i32_21 : i32
    scf.if %32 {
      %c128_i32_64 = arith.constant 128 : i32
      %127 = arith.addi %1, %c128_i32_64 : i32
      %128 = tpu.assume_multiple %127, 8 : i32
      %c0_65 = arith.constant 0 : index
      %129 = arith.index_cast %128 : i32 to index
      %c0_66 = arith.constant 0 : index
      %130 = vector.load %arg2[%c0_65, %129, %c0_66] : memref<1x256x8xbf16, #tpu.memory_space<vmem>>, vector<1x16x8xbf16>
      %131 = vector.shape_cast %130 : vector<1x16x8xbf16> to vector<16x8xbf16>
      %c0_67 = arith.constant 0 : index
      %c0_68 = arith.constant 0 : index
      %132 = vector.load %arg3[%c0_67, %c0_68] : memref<8x32xbf16, #tpu.memory_space<vmem>>, vector<8x32xbf16>
      %cst_69 = arith.constant dense<0.000000e+00> : vector<16x32xf32>
      %133 = tpu.matmul %131, %132, %cst_69 {dimension_numbers = #tpu.dot_dimension_numbers<[1], [0], [0], [1], [0, 0, 1, 1], [], []>} : vector<16x8xbf16>, vector<8x32xbf16>, vector<16x32xf32> -> vector<16x32xf32>
      %c0_70 = arith.constant 0 : index
      %c0_71 = arith.constant 0 : index
      %134 = vector.load %arg4[%c0_70, %c0_71] : memref<1x32xf32, #tpu.memory_space<vmem>>, vector<1x32xf32>
      %135 = vector.broadcast %134 : vector<1x32xf32> to vector<16x32xf32>
      %136 = arith.addf %133, %135 : vector<16x32xf32>
      %cst_72 = arith.constant 0.000000e+00 : f32
      %cst_73 = arith.constant 6.000000e+00 : f32
      %137 = vector.broadcast %cst_72 : f32 to vector<16x32xf32>
      %138 = arith.maximumf %137, %136 : vector<16x32xf32>
      %139 = vector.broadcast %cst_73 : f32 to vector<16x32xf32>
      %140 = arith.minimumf %139, %138 : vector<16x32xf32>
      %141 = arith.truncf %140 : vector<16x32xf32> to vector<16x32xbf16>
      %142 = vector.shape_cast %141 : vector<16x32xbf16> to vector<1x16x32xbf16>
      %c9 = arith.constant 9 : index
      %c1_74 = arith.constant 1 : index
      %c0_75 = arith.constant 0 : index
      %143 = vector.load %arg10[%c9, %c1_74, %c0_75] : memref<10x18x32xbf16, #tpu.memory_space<vmem>>, vector<1x16x32xbf16>
      tpu.vector_store %arg10[%c9, %c1_74, %c0_75], %142 {strides = array<i32>} : memref<10x18x32xbf16, #tpu.memory_space<vmem>>, vector<1x16x32xbf16>,
    } else {
    }
    %c0_22 = arith.constant 0 : index
    %c0_23 = arith.constant 0 : index
    %c0_24 = arith.constant 0 : index
    %33 = vector.load %arg5[%c0_22, %c0_23, %c0_24] : memref<3x3x32xf32, #tpu.memory_space<vmem>>, vector<3x3x32xf32>
    %cst_25 = arith.constant 0.000000e+00 : f32
    %34 = vector.broadcast %cst_25 : f32 to vector<8x16x32xf32>
    %c0_26 = arith.constant 0 : index
    %c0_27 = arith.constant 0 : index
    %c0_28 = arith.constant 0 : index
    %35 = vector.load %arg10[%c0_26, %c0_27, %c0_28] : memref<10x18x32xbf16, #tpu.memory_space<vmem>>, vector<8x16x32xbf16>
    %36 = arith.extf %35 : vector<8x16x32xbf16> to vector<8x16x32xf32>
    %37 = vector.extract_strided_slice %33 {offsets = [0, 0, 0], sizes = [1, 1, 32], strides = [1, 1, 1]} : vector<3x3x32xf32> to vector<1x1x32xf32>
    %38 = vector.shape_cast %37 : vector<1x1x32xf32> to vector<32xf32>
    %39 = vector.shape_cast %38 : vector<32xf32> to vector<1x1x32xf32>
    %40 = vector.broadcast %39 : vector<1x1x32xf32> to vector<8x16x32xf32>
    %41 = arith.mulf %36, %40 : vector<8x16x32xf32>
    %42 = arith.addf %34, %41 : vector<8x16x32xf32>
    %c0_29 = arith.constant 0 : index
    %c1_30 = arith.constant 1 : index
    %c0_31 = arith.constant 0 : index
    %43 = vector.load %arg10[%c0_29, %c1_30, %c0_31] : memref<10x18x32xbf16, #tpu.memory_space<vmem>>, vector<8x16x32xbf16>
    %44 = arith.extf %43 : vector<8x16x32xbf16> to vector<8x16x32xf32>
    %45 = vector.extract_strided_slice %33 {offsets = [0, 1, 0], sizes = [1, 1, 32], strides = [1, 1, 1]} : vector<3x3x32xf32> to vector<1x1x32xf32>
    %46 = vector.shape_cast %45 : vector<1x1x32xf32> to vector<32xf32>
    %47 = vector.shape_cast %46 : vector<32xf32> to vector<1x1x32xf32>
    %48 = vector.broadcast %47 : vector<1x1x32xf32> to vector<8x16x32xf32>
    %49 = arith.mulf %44, %48 : vector<8x16x32xf32>
    %50 = arith.addf %42, %49 : vector<8x16x32xf32>
    %c0_32 = arith.constant 0 : index
    %c2 = arith.constant 2 : index
    %c0_33 = arith.constant 0 : index
    %51 = vector.load %arg10[%c0_32, %c2, %c0_33] : memref<10x18x32xbf16, #tpu.memory_space<vmem>>, vector<8x16x32xbf16>
    %52 = arith.extf %51 : vector<8x16x32xbf16> to vector<8x16x32xf32>
    %53 = vector.extract_strided_slice %33 {offsets = [0, 2, 0], sizes = [1, 1, 32], strides = [1, 1, 1]} : vector<3x3x32xf32> to vector<1x1x32xf32>
    %54 = vector.shape_cast %53 : vector<1x1x32xf32> to vector<32xf32>
    %55 = vector.shape_cast %54 : vector<32xf32> to vector<1x1x32xf32>
    %56 = vector.broadcast %55 : vector<1x1x32xf32> to vector<8x16x32xf32>
    %57 = arith.mulf %52, %56 : vector<8x16x32xf32>
    %58 = arith.addf %50, %57 : vector<8x16x32xf32>
    %c1_34 = arith.constant 1 : index
    %c0_35 = arith.constant 0 : index
    %c0_36 = arith.constant 0 : index
    %59 = vector.load %arg10[%c1_34, %c0_35, %c0_36] : memref<10x18x32xbf16, #tpu.memory_space<vmem>>, vector<8x16x32xbf16>
    %60 = arith.extf %59 : vector<8x16x32xbf16> to vector<8x16x32xf32>
    %61 = vector.extract_strided_slice %33 {offsets = [1, 0, 0], sizes = [1, 1, 32], strides = [1, 1, 1]} : vector<3x3x32xf32> to vector<1x1x32xf32>
    %62 = vector.shape_cast %61 : vector<1x1x32xf32> to vector<32xf32>
    %63 = vector.shape_cast %62 : vector<32xf32> to vector<1x1x32xf32>
    %64 = vector.broadcast %63 : vector<1x1x32xf32> to vector<8x16x32xf32>
    %65 = arith.mulf %60, %64 : vector<8x16x32xf32>
    %66 = arith.addf %58, %65 : vector<8x16x32xf32>
    %c1_37 = arith.constant 1 : index
    %c1_38 = arith.constant 1 : index
    %c0_39 = arith.constant 0 : index
    %67 = vector.load %arg10[%c1_37, %c1_38, %c0_39] : memref<10x18x32xbf16, #tpu.memory_space<vmem>>, vector<8x16x32xbf16>
    %68 = arith.extf %67 : vector<8x16x32xbf16> to vector<8x16x32xf32>
    %69 = vector.extract_strided_slice %33 {offsets = [1, 1, 0], sizes = [1, 1, 32], strides = [1, 1, 1]} : vector<3x3x32xf32> to vector<1x1x32xf32>
    %70 = vector.shape_cast %69 : vector<1x1x32xf32> to vector<32xf32>
    %71 = vector.shape_cast %70 : vector<32xf32> to vector<1x1x32xf32>
    %72 = vector.broadcast %71 : vector<1x1x32xf32> to vector<8x16x32xf32>
    %73 = arith.mulf %68, %72 : vector<8x16x32xf32>
    %74 = arith.addf %66, %73 : vector<8x16x32xf32>
    %c1_40 = arith.constant 1 : index
    %c2_41 = arith.constant 2 : index
    %c0_42 = arith.constant 0 : index
    %75 = vector.load %arg10[%c1_40, %c2_41, %c0_42] : memref<10x18x32xbf16, #tpu.memory_space<vmem>>, vector<8x16x32xbf16>
    %76 = arith.extf %75 : vector<8x16x32xbf16> to vector<8x16x32xf32>
    %77 = vector.extract_strided_slice %33 {offsets = [1, 2, 0], sizes = [1, 1, 32], strides = [1, 1, 1]} : vector<3x3x32xf32> to vector<1x1x32xf32>
    %78 = vector.shape_cast %77 : vector<1x1x32xf32> to vector<32xf32>
    %79 = vector.shape_cast %78 : vector<32xf32> to vector<1x1x32xf32>
    %80 = vector.broadcast %79 : vector<1x1x32xf32> to vector<8x16x32xf32>
    %81 = arith.mulf %76, %80 : vector<8x16x32xf32>
    %82 = arith.addf %74, %81 : vector<8x16x32xf32>
    %c2_43 = arith.constant 2 : index
    %c0_44 = arith.constant 0 : index
    %c0_45 = arith.constant 0 : index
    %83 = vector.load %arg10[%c2_43, %c0_44, %c0_45] : memref<10x18x32xbf16, #tpu.memory_space<vmem>>, vector<8x16x32xbf16>
    %84 = arith.extf %83 : vector<8x16x32xbf16> to vector<8x16x32xf32>
    %85 = vector.extract_strided_slice %33 {offsets = [2, 0, 0], sizes = [1, 1, 32], strides = [1, 1, 1]} : vector<3x3x32xf32> to vector<1x1x32xf32>
    %86 = vector.shape_cast %85 : vector<1x1x32xf32> to vector<32xf32>
    %87 = vector.shape_cast %86 : vector<32xf32> to vector<1x1x32xf32>
    %88 = vector.broadcast %87 : vector<1x1x32xf32> to vector<8x16x32xf32>
    %89 = arith.mulf %84, %88 : vector<8x16x32xf32>
    %90 = arith.addf %82, %89 : vector<8x16x32xf32>
    %c2_46 = arith.constant 2 : index
    %c1_47 = arith.constant 1 : index
    %c0_48 = arith.constant 0 : index
    %91 = vector.load %arg10[%c2_46, %c1_47, %c0_48] : memref<10x18x32xbf16, #tpu.memory_space<vmem>>, vector<8x16x32xbf16>
    %92 = arith.extf %91 : vector<8x16x32xbf16> to vector<8x16x32xf32>
    %93 = vector.extract_strided_slice %33 {offsets = [2, 1, 0], sizes = [1, 1, 32], strides = [1, 1, 1]} : vector<3x3x32xf32> to vector<1x1x32xf32>
    %94 = vector.shape_cast %93 : vector<1x1x32xf32> to vector<32xf32>
    %95 = vector.shape_cast %94 : vector<32xf32> to vector<1x1x32xf32>
    %96 = vector.broadcast %95 : vector<1x1x32xf32> to vector<8x16x32xf32>
    %97 = arith.mulf %92, %96 : vector<8x16x32xf32>
    %98 = arith.addf %90, %97 : vector<8x16x32xf32>
    %c2_49 = arith.constant 2 : index
    %c2_50 = arith.constant 2 : index
    %c0_51 = arith.constant 0 : index
    %99 = vector.load %arg10[%c2_49, %c2_50, %c0_51] : memref<10x18x32xbf16, #tpu.memory_space<vmem>>, vector<8x16x32xbf16>
    %100 = arith.extf %99 : vector<8x16x32xbf16> to vector<8x16x32xf32>
    %101 = vector.extract_strided_slice %33 {offsets = [2, 2, 0], sizes = [1, 1, 32], strides = [1, 1, 1]} : vector<3x3x32xf32> to vector<1x1x32xf32>
    %102 = vector.shape_cast %101 : vector<1x1x32xf32> to vector<32xf32>
    %103 = vector.shape_cast %102 : vector<32xf32> to vector<1x1x32xf32>
    %104 = vector.broadcast %103 : vector<1x1x32xf32> to vector<8x16x32xf32>
    %105 = arith.mulf %100, %104 : vector<8x16x32xf32>
    %106 = arith.addf %98, %105 : vector<8x16x32xf32>
    %c0_52 = arith.constant 0 : index
    %c0_53 = arith.constant 0 : index
    %107 = vector.load %arg6[%c0_52, %c0_53] : memref<1x32xf32, #tpu.memory_space<vmem>>, vector<1x32xf32>
    %108 = vector.shape_cast %107 : vector<1x32xf32> to vector<1x1x32xf32>
    %109 = vector.broadcast %108 : vector<1x1x32xf32> to vector<8x16x32xf32>
    %110 = arith.addf %106, %109 : vector<8x16x32xf32>
    %cst_54 = arith.constant 0.000000e+00 : f32
    %cst_55 = arith.constant 6.000000e+00 : f32
    %111 = vector.broadcast %cst_54 : f32 to vector<8x16x32xf32>
    %112 = arith.maximumf %111, %110 : vector<8x16x32xf32>
    %113 = vector.broadcast %cst_55 : f32 to vector<8x16x32xf32>
    %114 = arith.minimumf %113, %112 : vector<8x16x32xf32>
    %115 = vector.shape_cast %114 : vector<8x16x32xf32> to vector<128x32xf32>
    %116 = arith.truncf %115 : vector<128x32xf32> to vector<128x32xbf16>
    %c0_56 = arith.constant 0 : index
    %c0_57 = arith.constant 0 : index
    %117 = vector.load %arg7[%c0_56, %c0_57] : memref<32x8xbf16, #tpu.memory_space<vmem>>, vector<32x8xbf16>
    %cst_58 = arith.constant dense<0.000000e+00> : vector<128x8xf32>
    %118 = tpu.matmul %116, %117, %cst_58 {dimension_numbers = #tpu.dot_dimension_numbers<[1], [0], [0], [1], [0, 0, 1, 1], [], []>} : vector<128x32xbf16>, vector<32x8xbf16>, vector<128x8xf32> -> vector<128x8xf32>
    %c0_59 = arith.constant 0 : index
    %c0_60 = arith.constant 0 : index
    %119 = vector.load %arg8[%c0_59, %c0_60] : memref<1x8xf32, #tpu.memory_space<vmem>>, vector<1x8xf32>
    %120 = vector.broadcast %119 : vector<1x8xf32> to vector<128x8xf32>
    %121 = arith.addf %118, %120 : vector<128x8xf32>
    %122 = arith.extf %7 : vector<128x8xbf16> to vector<128x8xf32>
    %123 = arith.addf %121, %122 : vector<128x8xf32>
    %124 = tpu.transpose %123, [1, 0] : vector<128x8xf32> -> vector<8x128xf32>
    %125 = vector.shape_cast %124 : vector<8x128xf32> to vector<1x8x128xf32>
    %c0_61 = arith.constant 0 : index
    %c0_62 = arith.constant 0 : index
    %c0_63 = arith.constant 0 : index
    %126 = vector.load %arg9[%c0_61, %c0_62, %c0_63] : memref<1x8x128xf32, #tpu.memory_space<vmem>>, vector<1x8x128xf32>
    tpu.vector_store %arg9[%c0_61, %c0_62, %c0_63], %125 {strides = array<i32>} : memref<1x8x128xf32, #tpu.memory_space<vmem>>, vector<1x8x128xf32>,
    return
  }
  func.func @transform_0(%arg0: i32, %arg1: i32) -> (i32, i32, i32) {
    %c0_i32 = arith.constant 0 : i32
    %c0_i32_0 = arith.constant 0 : i32
    %c0_i32_1 = arith.constant 0 : i32
    return %arg0, %c0_i32, %c0_i32_0 : i32, i32, i32
  }
  func.func @transform_1(%arg0: i32, %arg1: i32) -> (i32, i32) {
    %c0_i32 = arith.constant 0 : i32
    %c0_i32_0 = arith.constant 0 : i32
    %c0_i32_1 = arith.constant 0 : i32
    return %c0_i32, %c0_i32_0 : i32, i32
  }
  func.func @transform_2(%arg0: i32, %arg1: i32) -> (i32, i32) {
    %c0_i32 = arith.constant 0 : i32
    %c0_i32_0 = arith.constant 0 : i32
    %c0_i32_1 = arith.constant 0 : i32
    return %c0_i32, %c0_i32_0 : i32, i32
  }
  func.func @transform_3(%arg0: i32, %arg1: i32) -> (i32, i32, i32) {
    %c0_i32 = arith.constant 0 : i32
    %c0_i32_0 = arith.constant 0 : i32
    %c0_i32_1 = arith.constant 0 : i32
    %c0_i32_2 = arith.constant 0 : i32
    return %c0_i32, %c0_i32_0, %c0_i32_1 : i32, i32, i32
  }
  func.func @transform_4(%arg0: i32, %arg1: i32) -> (i32, i32) {
    %c0_i32 = arith.constant 0 : i32
    %c0_i32_0 = arith.constant 0 : i32
    %c0_i32_1 = arith.constant 0 : i32
    return %c0_i32, %c0_i32_0 : i32, i32
  }
  func.func @transform_5(%arg0: i32, %arg1: i32) -> (i32, i32) {
    %c0_i32 = arith.constant 0 : i32
    %c0_i32_0 = arith.constant 0 : i32
    %c0_i32_1 = arith.constant 0 : i32
    return %c0_i32, %c0_i32_0 : i32, i32
  }
  func.func @transform_6(%arg0: i32, %arg1: i32) -> (i32, i32) {
    %c0_i32 = arith.constant 0 : i32
    %c0_i32_0 = arith.constant 0 : i32
    %c0_i32_1 = arith.constant 0 : i32
    return %c0_i32, %c0_i32_0 : i32, i32
  }
  func.func @transform_7(%arg0: i32, %arg1: i32) -> (i32, i32, i32) {
    %c0_i32 = arith.constant 0 : i32
    %c0_i32_0 = arith.constant 0 : i32
    return %arg0, %c0_i32, %arg1 : i32, i32, i32
  }
}

</mosaic_0001>

<llo_original>
// kernel: tpu_custom_call.1
$region0: #{tpu_custom_call.1}
  #allocation0 [shape = 'u32[]', space=smem, size = 0x4, offset = 0x4, fixed_abs, tag = 'smem constant byte address 0x4 - core index']
  #allocation1 [shape = 'u32[72,128]{1,0:T(1,128)}', space=vmem, size = 0x9000, scoped, tag = 'internal scratch']
  #allocation2 [shape = 'bf16[10,18,32]{2,1,0:T(8,128)(2,1)}', space=vmem, size = 0xf000, scoped, tag = 'scratch operand']
  %s0 = inlined_call_operand.vmem [shape: bf16[2,256,8], index: 0, kind: input, shape index: {}]
  %s1 = inlined_call_operand.vmem [shape: bf16[8,32], index: 1, kind: input, shape index: {}]
  %s2 = inlined_call_operand.vmem [shape: f32[1,32], index: 2, kind: input, shape index: {}]
  %s3 = inlined_call_operand.vmem [shape: f32[3,3,32], index: 3, kind: input, shape index: {}]
  %s4 = inlined_call_operand.vmem [shape: f32[1,32], index: 4, kind: input, shape index: {}]
  %s5 = inlined_call_operand.vmem [shape: bf16[32,8], index: 5, kind: input, shape index: {}]
  %s6 = inlined_call_operand.vmem [shape: f32[1,8], index: 6, kind: input, shape index: {}]
  %s7 = inlined_call_operand.hbm [shape: f32[2,8,256], index: 7, kind: output, shape index: {}]
  %s8 = sld [smem:[#allocation0]]
  $region77: #{tpu_custom_call.1} parent=0
    _
  %s10 = ssub.s32 1, %s8
  %s11 = scalar_select 0, %s10, %s8
  $region1: #{tpu_custom_call.1} parent=0
    #allocation3 [shape = 'u8[8192]{0}', space=vmem, size = 0x2000, scoped, tag = 'output window, operand 0']
    #allocation4 [shape = 's32[2]{0}', space=sflag, size = 0x8, scoped, tag = 'scoped memory for tpu_custom_call.1']
    %12 = vsyncpa [#allocation4], 0
    %s13 = scalar_lea.sflag [#allocation4], 1
    %14 = vsyncpa %s13, 0
    loop: start=0, step=1, limit=6
    $region2: #{tpu_custom_call.1} parent=1 // loop_pre_header
      _
    $region3: #{tpu_custom_call.1} parent=1 // loop_header
      %s16 = sphi 0, %s20
      %p17 = scmp.ge.s32.totalorder %s16, 6
      %s23 = sphi 0, %s35
      %s24 = sphi 0, %s31
      %s25 = sphi 0, %s23
      %s26 = sphi 0, %s24
      %s27 = sphi 0, %s25
      %s28 = sphi 0, %s26
      %s38 = sphi 0, %s40
      %s41 = sphi 0, %s38
      %s42 = sphi 0, %s41
      %s58 = sphi 0, %s42
      %s62 = sphi 0, %s62
      %s64 = sphi 0, %s62
      %s65 = sphi 0, %s64
      %s79 = sphi 0, %s65
      %s83 = sphi 0, %s83
      %s85 = sphi 0, %s83
      %s86 = sphi 0, %s85
      %s100 = sphi 0, %s86
      %s104 = sphi 0, %s104
      %s106 = sphi 0, %s104
      %s107 = sphi 0, %s106
      %s121 = sphi 0, %s107
      %s125 = sphi 0, %s125
      %s127 = sphi 0, %s125
      %s128 = sphi 0, %s127
      %s142 = sphi 0, %s128
      %s146 = sphi 0, %s146
      %s148 = sphi 0, %s146
      %s149 = sphi 0, %s148
      %s163 = sphi 0, %s149
      %s167 = sphi 0, %s167
      %s169 = sphi 0, %s167
      %s170 = sphi 0, %s169
      %s184 = sphi 0, %s170
      %s192 = sphi 0, %s194
      %s195 = sphi 0, %s192
      %s196 = sphi 0, %s195
      %s212 = sphi 0, %s196
    $region4: #{tpu_custom_call.1} parent=1 // loop_header_branch
      %19 = sbr.rel (%p17) target = $region8
    $region5: #{tpu_custom_call.1} parent=1 // loop_body
      %s21 = ssub.s32 %s16, 1
      %s22 = ssub.s32 %s16, 2
      %s29 = sadd.s32 1, %s24
      %p30 = scmp.ge.s32.totalorder %s29, 2
      %s31 = scalar_select %p30, 0, %s29
      %s32 = sadd.s32 1, %s23
      %s33 = scalar_select %p30, %s32, %s23
      %p34 = scmp.ge.s32.totalorder %s33, 2
      %s35 = scalar_select %p34, 0, %s33
      %s36 = ssub.s32 %s23, %s35
      %p37 = scmp.eq.s32.totalorder %s36, 0
      %s39 = sadd.s32 %s38, 1
      %s40 = scalar_select %p37, %s38, %s39
      %p43 = pneg %p37
      %p44 = scmp.eq.s32.totalorder %s16, 3
      %p45 = por %p43, %p44
      %p46 = scmp.ne.s32.totalorder %s38, %s41
      %p47 = scmp.eq.s32.totalorder %s16, 0
      %p48 = por %p46, %p47
      %p49 = scmp.ne.s32.totalorder %s38, %s41
      %p50 = scmp.eq.s32.totalorder %s21, 3
      %p51 = por %p49, %p50
      %p52 = scmp.ne.s32.totalorder %s41, %s42
      %p53 = scmp.eq.s32.totalorder %s21, 0
      %p54 = por %p52, %p53
      %p55 = scmp.ne.s32.totalorder %s41, %s42
      %p56 = scmp.eq.s32.totalorder %s22, 3
      %p57 = por %p55, %p56
      %p59 = scmp.ne.s32.totalorder %s42, %s58
      %p60 = scmp.eq.s32.totalorder %s22, 0
      %p61 = por %p59, %p60
      %s63 = sadd.s32 %s62, 1
      %p66 = scmp.eq.s32.totalorder %s16, 3
      %p67 = scmp.ne.s32.totalorder %s62, %s64
      %p68 = scmp.eq.s32.totalorder %s16, 0
      %p69 = por %p67, %p68
      %p70 = scmp.ne.s32.totalorder %s62, %s64
      %p71 = scmp.eq.s32.totalorder %s21, 3
      %p72 = por %p70, %p71
      %p73 = scmp.ne.s32.totalorder %s64, %s65
      %p74 = scmp.eq.s32.totalorder %s21, 0
      %p75 = por %p73, %p74
      %p76 = scmp.ne.s32.totalorder %s64, %s65
      %p77 = scmp.eq.s32.totalorder %s22, 3
      %p78 = por %p76, %p77
      %p80 = scmp.ne.s32.totalorder %s65, %s79
      %p81 = scmp.eq.s32.totalorder %s22, 0
      %p82 = por %p80, %p81
      %s84 = sadd.s32 %s83, 1
      %p87 = scmp.eq.s32.totalorder %s16, 3
      %p88 = scmp.ne.s32.totalorder %s83, %s85
      %p89 = scmp.eq.s32.totalorder %s16, 0
      %p90 = por %p88, %p89
      %p91 = scmp.ne.s32.totalorder %s83, %s85
      %p92 = scmp.eq.s32.totalorder %s21, 3
      %p93 = por %p91, %p92
      %p94 = scmp.ne.s32.totalorder %s85, %s86
      %p95 = scmp.eq.s32.totalorder %s21, 0
      %p96 = por %p94, %p95
      %p97 = scmp.ne.s32.totalorder %s85, %s86
      %p98 = scmp.eq.s32.totalorder %s22, 3
      %p99 = por %p97, %p98
      %p101 = scmp.ne.s32.totalorder %s86, %s100
      %p102 = scmp.eq.s32.totalorder %s22, 0
      %p103 = por %p101, %p102
      %s105 = sadd.s32 %s104, 1
      %p108 = scmp.eq.s32.totalorder %s16, 3
      %p109 = scmp.ne.s32.totalorder %s104, %s106
      %p110 = scmp.eq.s32.totalorder %s16, 0
      %p111 = por %p109, %p110
      %p112 = scmp.ne.s32.totalorder %s104, %s106
      %p113 = scmp.eq.s32.totalorder %s21, 3
      %p114 = por %p112, %p113
      %p115 = scmp.ne.s32.totalorder %s106, %s107
      %p116 = scmp.eq.s32.totalorder %s21, 0
      %p117 = por %p115, %p116
      %p118 = scmp.ne.s32.totalorder %s106, %s107
      %p119 = scmp.eq.s32.totalorder %s22, 3
      %p120 = por %p118, %p119
      %p122 = scmp.ne.s32.totalorder %s107, %s121
      %p123 = scmp.eq.s32.totalorder %s22, 0
      %p124 = por %p122, %p123
      %s126 = sadd.s32 %s125, 1
      %p129 = scmp.eq.s32.totalorder %s16, 3
      %p130 = scmp.ne.s32.totalorder %s125, %s127
      %p131 = scmp.eq.s32.totalorder %s16, 0
      %p132 = por %p130, %p131
      %p133 = scmp.ne.s32.totalorder %s125, %s127
      %p134 = scmp.eq.s32.totalorder %s21, 3
      %p135 = por %p133, %p134
      %p136 = scmp.ne.s32.totalorder %s127, %s128
      %p137 = scmp.eq.s32.totalorder %s21, 0
      %p138 = por %p136, %p137
      %p139 = scmp.ne.s32.totalorder %s127, %s128
      %p140 = scmp.eq.s32.totalorder %s22, 3
      %p141 = por %p139, %p140
      %p143 = scmp.ne.s32.totalorder %s128, %s142
      %p144 = scmp.eq.s32.totalorder %s22, 0
      %p145 = por %p143, %p144
      %s147 = sadd.s32 %s146, 1
      %p150 = scmp.eq.s32.totalorder %s16, 3
      %p151 = scmp.ne.s32.totalorder %s146, %s148
      %p152 = scmp.eq.s32.totalorder %s16, 0
      %p153 = por %p151, %p152
      %p154 = scmp.ne.s32.totalorder %s146, %s148
      %p155 = scmp.eq.s32.totalorder %s21, 3
      %p156 = por %p154, %p155
      %p157 = scmp.ne.s32.totalorder %s148, %s149
      %p158 = scmp.eq.s32.totalorder %s21, 0
      %p159 = por %p157, %p158
      %p160 = scmp.ne.s32.totalorder %s148, %s149
      %p161 = scmp.eq.s32.totalorder %s22, 3
      %p162 = por %p160, %p161
      %p164 = scmp.ne.s32.totalorder %s149, %s163
      %p165 = scmp.eq.s32.totalorder %s22, 0
      %p166 = por %p164, %p165
      %s168 = sadd.s32 %s167, 1
      %p171 = scmp.eq.s32.totalorder %s16, 3
      %p172 = scmp.ne.s32.totalorder %s167, %s169
      %p173 = scmp.eq.s32.totalorder %s16, 0
      %p174 = por %p172, %p173
      %p175 = scmp.ne.s32.totalorder %s167, %s169
      %p176 = scmp.eq.s32.totalorder %s21, 3
      %p177 = por %p175, %p176
      %p178 = scmp.ne.s32.totalorder %s169, %s170
      %p179 = scmp.eq.s32.totalorder %s21, 0
      %p180 = por %p178, %p179
      %p181 = scmp.ne.s32.totalorder %s169, %s170
      %p182 = scmp.eq.s32.totalorder %s22, 3
      %p183 = por %p181, %p182
      %p185 = scmp.ne.s32.totalorder %s170, %s184
      %p186 = scmp.eq.s32.totalorder %s22, 0
      %p187 = por %p185, %p186
      %s188 = ssub.s32 %s23, %s35
      %s189 = ssub.s32 %s24, %s31
      %s190 = sor.u32 %s188, %s189
      %p191 = scmp.eq.s32.totalorder %s190, 0
      %s193 = sadd.s32 %s192, 1
      %s194 = scalar_select %p191, %s192, %s193
      %p197 = pneg %p191
      %p198 = scmp.eq.s32.totalorder %s16, 3
      %p199 = por %p197, %p198
      %p200 = scmp.ne.s32.totalorder %s192, %s195
      %p201 = scmp.eq.s32.totalorder %s16, 0
      %p202 = por %p200, %p201
      %p203 = scmp.ne.s32.totalorder %s192, %s195
      %p204 = scmp.eq.s32.totalorder %s21, 3
      %p205 = por %p203, %p204
      %p206 = scmp.ne.s32.totalorder %s195, %s196
      %p207 = scmp.eq.s32.totalorder %s21, 0
      %p208 = por %p206, %p207
      %p209 = scmp.ne.s32.totalorder %s195, %s196
      %p210 = scmp.eq.s32.totalorder %s22, 3
      %p211 = por %p209, %p210
      %p213 = scmp.ne.s32.totalorder %s196, %s212
      %p214 = scmp.eq.s32.totalorder %s22, 0
      %p215 = por %p213, %p214
      %p216 = scmp.le.s32.totalorder 1, %s16
      %p217 = scmp.lt.s32.totalorder %s16, 5
      %p218 = pnand %p216, %p217
      %p219 = pneg %p218
      // Predicated region
      $region9: #{tpu_custom_call.1} parent=5 // pred_check
        _
      $region10: #{tpu_custom_call.1} parent=5 // pred_check_branch
        %221 = sbr.rel (%p218) target = $region12
      $region11: #{tpu_custom_call.1} parent=5 // pred_region
        %s222 = ssub.s32 %s16, 1
        // Predicated region
        $region13: #{tpu_custom_call.1} parent=11 // pred_check
          %p223 = pneg %p75
        $region14: #{tpu_custom_call.1} parent=11 // pred_check_branch
          %225 = sbr.rel (%p223) target = $region16
        $region15: #{tpu_custom_call.1} parent=11 // pred_region
          _
        $region16: #{tpu_custom_call.1} parent=11 // pred_fallthru
          _
        // Predicated region
        $region17: #{tpu_custom_call.1} parent=11 // pred_check
          %p226 = pneg %p96
        $region18: #{tpu_custom_call.1} parent=11 // pred_check_branch
          %228 = sbr.rel (%p226) target = $region20
        $region19: #{tpu_custom_call.1} parent=11 // pred_region
          _
        $region20: #{tpu_custom_call.1} parent=11 // pred_fallthru
          _
        // Predicated region
        $region21: #{tpu_custom_call.1} parent=11 // pred_check
          %p229 = pneg %p117
        $region22: #{tpu_custom_call.1} parent=11 // pred_check_branch
          %231 = sbr.rel (%p229) target = $region24
        $region23: #{tpu_custom_call.1} parent=11 // pred_region
          _
        $region24: #{tpu_custom_call.1} parent=11 // pred_fallthru
          _
        // Predicated region
        $region25: #{tpu_custom_call.1} parent=11 // pred_check
          %p232 = pneg %p138
        $region26: #{tpu_custom_call.1} parent=11 // pred_check_branch
          %234 = sbr.rel (%p232) target = $region28
        $region27: #{tpu_custom_call.1} parent=11 // pred_region
          _
        $region28: #{tpu_custom_call.1} parent=11 // pred_fallthru
          _
        // Predicated region
        $region29: #{tpu_custom_call.1} parent=11 // pred_check
          %p235 = pneg %p159
        $region30: #{tpu_custom_call.1} parent=11 // pred_check_branch
          %237 = sbr.rel (%p235) target = $region32
        $region31: #{tpu_custom_call.1} parent=11 // pred_region
          _
        $region32: #{tpu_custom_call.1} parent=11 // pred_fallthru
          _
        // Predicated region
        $region33: #{tpu_custom_call.1} parent=11 // pred_check
          %p238 = pneg %p180
        $region34: #{tpu_custom_call.1} parent=11 // pred_check_branch
          %240 = sbr.rel (%p238) target = $region36
        $region35: #{tpu_custom_call.1} parent=11 // pred_region
          _
        $region36: #{tpu_custom_call.1} parent=11 // pred_fallthru
          _
      $region12: #{tpu_custom_call.1} parent=5 // pred_fallthru
        _
      %p241 = scmp.lt.s32.totalorder %s16, 4
      // Predicated region
      $region37: #{tpu_custom_call.1} parent=5 // pred_check
        %p242 = pneg %p241
      $region38: #{tpu_custom_call.1} parent=5 // pred_check_branch
        %244 = sbr.rel (%p242) target = $region40
      $region39: #{tpu_custom_call.1} parent=5 // pred_region
        // Predicated region
        $region41: #{tpu_custom_call.1} parent=39 // pred_check
          %p245 = pneg %p48
        $region42: #{tpu_custom_call.1} parent=39 // pred_check_branch
          %247 = sbr.rel (%p245) target = $region44
        $region43: #{tpu_custom_call.1} parent=39 // pred_region
          %p248 = scmp.lt.s32.totalorder %s23, 1
          %s249 = scalar_select %p248, %s23, 1
          %s250 = smul.addr %s249, 32
          %s251 = smul.addr %s250, 4
          %s252 = scalar_lea.vmem %s0, %s251
        $region44: #{tpu_custom_call.1} parent=39 // pred_fallthru
          _
      $region40: #{tpu_custom_call.1} parent=5 // pred_fallthru
        _
      %p253 = scmp.le.s32.totalorder 1, %s16
      %p254 = scmp.lt.s32.totalorder %s16, 5
      %p255 = pnand %p253, %p254
      %p256 = pneg %p255
      // Predicated region
      $region45: #{tpu_custom_call.1} parent=5 // pred_check
        _
      $region46: #{tpu_custom_call.1} parent=5 // pred_check_branch
        %258 = sbr.rel (%p255) target = $region48
      $region47: #{tpu_custom_call.1} parent=5 // pred_region
        %s259 = ssub.s32 %s16, 1
        %p260 = scmp.lt.s32.totalorder %s25, 1
        %s261 = scalar_select %p260, %s25, 1
        %s262 = smul.addr %s261, 32
        %s263 = smul.addr %s262, 4
        %s264 = scalar_lea.vmem %s0, %s263
        %p265 = pneg %p54
        %p266 = pneg %p51
        %p267 = pneg %p75
        %p268 = pneg %p72
        %p269 = pneg %p96
        %p270 = pneg %p93
        %p271 = pneg %p117
        %p272 = pneg %p114
        %p273 = pneg %p138
        %p274 = pneg %p135
        %p275 = pneg %p159
        %p276 = pneg %p156
        %p277 = pneg %p180
        %p278 = pneg %p177
        %p279 = pneg %p208
        %p280 = pneg %p205
        %s281 = sand.u32 %s195, 1
        %s282 = scalar_lea.sflag [#allocation4], %s281
        %s283 = sand.u32 %s195, 1
        %s284 = smul.addr %s283, 8
        %s285 = scalar_lea.vmem [#allocation3], %s284
        %p286 = scmp.lt.s32.totalorder %s25, 1
        %s287 = scalar_select %p286, %s25, 1
        %s288 = smul.addr %s287, 32
        %s289 = smul.addr %s288, 4
        %s290 = scalar_lea.vmem %s0, %s289
        %s292 = smul.u32 %s26, 128
        %vm293 = vcmask 253952
        %vm294 = vsmask.f32 256
        %vm295 = vmand %vm293, %vm294
        %v296 = vld [vmem:[#allocation2] sm:$0x1]
        %v297 = vsel %vm295, 0, %v296
        %298 = vst [vmem:[#allocation2] sm:$0x1] %v297
        %v299 = vld [vmem:[#allocation2 + $0xc] sm:$0x1]
        %v300 = vsel %vm295, 0, %v299
        %301 = vst [vmem:[#allocation2 + $0xc] sm:$0x1] %v300
        %v302 = vld [vmem:[#allocation2 + $0x18] sm:$0x1]
        %v303 = vsel %vm295, 0, %v302
        %304 = vst [vmem:[#allocation2 + $0x18] sm:$0x1] %v303
        %v305 = vld [vmem:[#allocation2 + $0x24] sm:$0x1]
        %v306 = vsel %vm295, 0, %v305
        %307 = vst [vmem:[#allocation2 + $0x24] sm:$0x1] %v306
        %v308 = vld [vmem:[#allocation2 + $0x30] sm:$0x1]
        %v309 = vsel %vm295, 0, %v308
        %310 = vst [vmem:[#allocation2 + $0x30] sm:$0x1] %v309
        %v311 = vld [vmem:[#allocation2 + $0x3c] sm:$0x1]
        %v312 = vsel %vm295, 0, %v311
        %313 = vst [vmem:[#allocation2 + $0x3c] sm:$0x1] %v312
        %v314 = vld [vmem:[#allocation2 + $0x48] sm:$0x1]
        %v315 = vsel %vm295, 0, %v314
        %316 = vst [vmem:[#allocation2 + $0x48] sm:$0x1] %v315
        %v317 = vld [vmem:[#allocation2 + $0x54] sm:$0x1]
        %v318 = vsel %vm295, 0, %v317
        %319 = vst [vmem:[#allocation2 + $0x54] sm:$0x1] %v318
        %v320 = vld [vmem:[#allocation2 + $0x60] sm:$0x1]
        %v321 = vsel %vm295, 0, %v320
        %322 = vst [vmem:[#allocation2 + $0x60] sm:$0x1] %v321
        %v323 = vld [vmem:[#allocation2 + $0x6c] sm:$0x1]
        %v324 = vsel %vm295, 0, %v323
        %325 = vst [vmem:[#allocation2 + $0x6c] sm:$0x1] %v324
        %vm326 = vsmask.f32 7938
        %vm327 = vmand %vm293, %vm326
        %v328 = vld [vmem:[#allocation2 + $0x8] sm:$0x1]
        %v329 = vsel %vm327, 0, %v328
        %330 = vst [vmem:[#allocation2 + $0x8] sm:$0x1] %v329
        %v331 = vld [vmem:[#allocation2 + $0x14] sm:$0x1]
        %v332 = vsel %vm327, 0, %v331
        %333 = vst [vmem:[#allocation2 + $0x14] sm:$0x1] %v332
        %v334 = vld [vmem:[#allocation2 + $0x20] sm:$0x1]
        %v335 = vsel %vm327, 0, %v334
        %336 = vst [vmem:[#allocation2 + $0x20] sm:$0x1] %v335
        %v337 = vld [vmem:[#allocation2 + $0x2c] sm:$0x1]
        %v338 = vsel %vm327, 0, %v337
        %339 = vst [vmem:[#allocation2 + $0x2c] sm:$0x1] %v338
        %v340 = vld [vmem:[#allocation2 + $0x38] sm:$0x1]
        %v341 = vsel %vm327, 0, %v340
        %342 = vst [vmem:[#allocation2 + $0x38] sm:$0x1] %v341
        %v343 = vld [vmem:[#allocation2 + $0x44] sm:$0x1]
        %v344 = vsel %vm327, 0, %v343
        %345 = vst [vmem:[#allocation2 + $0x44] sm:$0x1] %v344
        %v346 = vld [vmem:[#allocation2 + $0x50] sm:$0x1]
        %v347 = vsel %vm327, 0, %v346
        %348 = vst [vmem:[#allocation2 + $0x50] sm:$0x1] %v347
        %v349 = vld [vmem:[#allocation2 + $0x5c] sm:$0x1]
        %v350 = vsel %vm327, 0, %v349
        %351 = vst [vmem:[#allocation2 + $0x5c] sm:$0x1] %v350
        %v352 = vld [vmem:[#allocation2 + $0x68] sm:$0x1]
        %v353 = vsel %vm327, 0, %v352
        %354 = vst [vmem:[#allocation2 + $0x68] sm:$0x1] %v353
        %v355 = vld [vmem:[#allocation2 + $0x74] sm:$0x1]
        %v356 = vsel %vm327, 0, %v355
        %357 = vst [vmem:[#allocation2 + $0x74] sm:$0x1] %v356
        %s358 = sshra.s32 %s292, 3
        %s359 = sand.u32 %s292, 7
        %s360 = smul.addr %s358, 4
        %s361 = scalar_lea.vmem %s290, %s360
        %v362 = vld [vmem:[%s361] sm:$0xf]
        %v363 = vld [vmem:[%s361 + $0x4] sm:$0xf]
        %v364 = vld [vmem:[%s361 + $0x8] sm:$0xf]
        %v365 = vld [vmem:[%s361 + $0xc] sm:$0xf]
        %v366 = vld [vmem:[%s361 + $0x10] sm:$0xf]
        %v367 = vld [vmem:[%s361 + $0x14] sm:$0xf]
        %v368 = vld [vmem:[%s361 + $0x18] sm:$0xf]
        %v369 = vld [vmem:[%s361 + $0x1c] sm:$0xf]
        %v370 = vld [vmem:[%s361 + $0x20] sm:$0xf]
        %v371 = vld [vmem:[%s361 + $0x24] sm:$0xf]
        %v372 = vld [vmem:[%s361 + $0x28] sm:$0xf]
        %v373 = vld [vmem:[%s361 + $0x2c] sm:$0xf]
        %v374 = vld [vmem:[%s361 + $0x30] sm:$0xf]
        %v375 = vld [vmem:[%s361 + $0x34] sm:$0xf]
        %v376 = vld [vmem:[%s361 + $0x38] sm:$0xf]
        %v377 = vld [vmem:[%s361 + $0x3c] sm:$0xf]
        %v378 = vld [vmem:[%s1] sm:$0xf]
        %v379 = vld [vmem:[%s2] sm:$0x1]
        %v381 = vperm.slane %v379, 0
        %v399 = vunpack.c.l.b16 %v362
        %v400 = vunpack.c.l.b16 %v363
        %v401 = vunpack.c.l.b16 %v364
        %v402 = vunpack.c.l.b16 %v365
        %v403 = vunpack.c.l.b16 %v366
        %v404 = vunpack.c.l.b16 %v367
        %v405 = vunpack.c.l.b16 %v368
        %v406 = vunpack.c.l.b16 %v369
        %v407 = vunpack.c.l.b16 %v370
        %v408 = vunpack.c.l.b16 %v371
        %v409 = vunpack.c.l.b16 %v372
        %v410 = vunpack.c.l.b16 %v373
        %v411 = vunpack.c.l.b16 %v374
        %v412 = vunpack.c.l.b16 %v375
        %v413 = vunpack.c.l.b16 %v376
        %v414 = vunpack.c.l.b16 %v377
        %v415 = vpack.c.b16 %v400, %v399
        %v416 = vpack.c.b16 %v402, %v401
        %v417 = vpack.c.b16 %v404, %v403
        %v418 = vpack.c.b16 %v406, %v405
        %v419 = vpack.c.b16 %v408, %v407
        %v420 = vpack.c.b16 %v410, %v409
        %v421 = vpack.c.b16 %v412, %v411
        %v422 = vpack.c.b16 %v414, %v413
        %vm423 = vcmask 64512
        %v425 = vsel %vm423, %v415, 0
        %v428 = vsel %vm423, %v416, 0
        %v431 = vsel %vm423, %v417, 0
        %v434 = vsel %vm423, %v418, 0
        %v437 = vsel %vm423, %v419, 0
        %v440 = vsel %vm423, %v420, 0
        %v443 = vsel %vm423, %v421, 0
        %v446 = vsel %vm423, %v422, 0
        %vm448 = vcmask 1043456
        %v450 = vsel %vm448, %v378, 0
        %452 = vmatpush.bf16.msra.mxu0 0
        %453 = vmatpush.bf16.msra.mxu0 0
        %454 = vmatpush.bf16.msra.mxu0 0
        %455 = vmatpush.bf16.msra.mxu0 0
        %456 = vmatpush.bf16.msra.mxu0 0
        %457 = vmatpush.bf16.msra.mxu0 0
        %458 = vmatpush.bf16.msra.mxu0 0
        %459 = vmatpush.bf16.msra.mxu0 %v450
        %460 = vmatmul.bf16.gmra.mxu0 %v425
        %v461 = vpop.f32.mrf.mxu0
        %v462 = vadd.f32 %v381, %v461
        %v463 = vpop.f32.mrf.mxu0
        %v464 = vadd.f32 %v381, %v463
        %465 = vmatmul.bf16.gmra.mxu0 %v428
        %v466 = vpop.f32.mrf.mxu0
        %v467 = vadd.f32 %v381, %v466
        %v468 = vpop.f32.mrf.mxu0
        %v469 = vadd.f32 %v381, %v468
        %470 = vmatmul.bf16.gmra.mxu0 %v431
        %v471 = vpop.f32.mrf.mxu0
        %v472 = vadd.f32 %v381, %v471
        %v473 = vpop.f32.mrf.mxu0
        %v474 = vadd.f32 %v381, %v473
        %475 = vmatmul.bf16.gmra.mxu0 %v434
        %v476 = vpop.f32.mrf.mxu0
        %v477 = vadd.f32 %v381, %v476
        %v478 = vpop.f32.mrf.mxu0
        %v479 = vadd.f32 %v381, %v478
        %480 = vmatmul.bf16.gmra.mxu0 %v437
        %v481 = vpop.f32.mrf.mxu0
        %v482 = vadd.f32 %v381, %v481
        %v483 = vpop.f32.mrf.mxu0
        %v484 = vadd.f32 %v381, %v483
        %485 = vmatmul.bf16.gmra.mxu0 %v440
        %v486 = vpop.f32.mrf.mxu0
        %v487 = vadd.f32 %v381, %v486
        %v488 = vpop.f32.mrf.mxu0
        %v489 = vadd.f32 %v381, %v488
        %490 = vmatmul.bf16.gmra.mxu0 %v443
        %v491 = vpop.f32.mrf.mxu0
        %v492 = vadd.f32 %v381, %v491
        %v493 = vpop.f32.mrf.mxu0
        %v494 = vadd.f32 %v381, %v493
        %495 = vmatmul.bf16.gmra.mxu0 %v446
        %v496 = vpop.f32.mrf.mxu0
        %v497 = vadd.f32 %v381, %v496
        %v498 = vpop.f32.mrf.mxu0
        %v499 = vadd.f32 %v381, %v498
        %500 = vdwg.mxu0
        %v501 = vmax.f32 %v462, 0.0
        %v502 = vmax.f32 %v464, 0.0
        %v503 = vmax.f32 %v467, 0.0
        %v504 = vmax.f32 %v469, 0.0
        %v505 = vmax.f32 %v472, 0.0
        %v506 = vmax.f32 %v474, 0.0
        %v507 = vmax.f32 %v477, 0.0
        %v508 = vmax.f32 %v479, 0.0
        %v509 = vmax.f32 %v482, 0.0
        %v510 = vmax.f32 %v484, 0.0
        %v511 = vmax.f32 %v487, 0.0
        %v512 = vmax.f32 %v489, 0.0
        %v513 = vmax.f32 %v492, 0.0
        %v514 = vmax.f32 %v494, 0.0
        %v515 = vmax.f32 %v497, 0.0
        %v516 = vmax.f32 %v499, 0.0
        %v517 = vmin.f32 %v501, 6.0
        %v518 = vmin.f32 %v502, 6.0
        %v519 = vmin.f32 %v503, 6.0
        %v520 = vmin.f32 %v504, 6.0
        %v521 = vmin.f32 %v505, 6.0
        %v522 = vmin.f32 %v506, 6.0
        %v523 = vmin.f32 %v507, 6.0
        %v524 = vmin.f32 %v508, 6.0
        %v525 = vmin.f32 %v509, 6.0
        %v526 = vmin.f32 %v510, 6.0
        %v527 = vmin.f32 %v511, 6.0
        %v528 = vmin.f32 %v512, 6.0
        %v529 = vmin.f32 %v513, 6.0
        %v530 = vmin.f32 %v514, 6.0
        %v531 = vmin.f32 %v515, 6.0
        %v532 = vmin.f32 %v516, 6.0
        %v533 = vpack.c.bf16 %v517, %v517
        %v534 = vpack.c.bf16 %v518, %v518
        %v535 = vpack.c.bf16 %v519, %v519
        %v536 = vpack.c.bf16 %v520, %v520
        %v537 = vpack.c.bf16 %v521, %v521
        %v538 = vpack.c.bf16 %v522, %v522
        %v539 = vpack.c.bf16 %v523, %v523
        %v540 = vpack.c.bf16 %v524, %v524
        %v541 = vpack.c.bf16 %v525, %v525
        %v542 = vpack.c.bf16 %v526, %v526
        %v543 = vpack.c.bf16 %v527, %v527
        %v544 = vpack.c.bf16 %v528, %v528
        %v545 = vpack.c.bf16 %v529, %v529
        %v546 = vpack.c.bf16 %v530, %v530
        %v547 = vpack.c.bf16 %v531, %v531
        %v548 = vpack.c.bf16 %v532, %v532
        %vm549 = vsmask.f32 4368
        %vm550 = vmor %vm294, %vm549
        %v552 = vshrl.u32 %v533, 16
        %v554 = vrot.slane %v552, 7
        %v555 = vshll.u32 %v533, 16
        %v557 = vor.u32 %v554, %v555
        %v558 = vrot.slane %v554, 4
        %v560 = vshrl.u32 %v534, 16
        %v562 = vrot.slane %v560, 7
        %v563 = vshll.u32 %v534, 16
        %v565 = vor.u32 %v562, %v563
        %v566 = vsel %vm550, %v558, %v565
        %v567 = vrot.slane %v562, 4
        %v569 = vshrl.u32 %v535, 16
        %v571 = vrot.slane %v569, 7
        %v572 = vshll.u32 %v535, 16
        %v574 = vor.u32 %v571, %v572
        %v575 = vrot.slane %v571, 4
        %v577 = vshrl.u32 %v536, 16
        %v579 = vrot.slane %v577, 7
        %v580 = vshll.u32 %v536, 16
        %v582 = vor.u32 %v579, %v580
        %v583 = vsel %vm550, %v575, %v582
        %v584 = vrot.slane %v579, 4
        %v586 = vshrl.u32 %v537, 16
        %v588 = vrot.slane %v586, 7
        %v589 = vshll.u32 %v537, 16
        %v591 = vor.u32 %v588, %v589
        %v592 = vrot.slane %v588, 4
        %v594 = vshrl.u32 %v538, 16
        %v596 = vrot.slane %v594, 7
        %v597 = vshll.u32 %v538, 16
        %v599 = vor.u32 %v596, %v597
        %v600 = vsel %vm550, %v592, %v599
        %v601 = vrot.slane %v596, 4
        %v603 = vshrl.u32 %v539, 16
        %v605 = vrot.slane %v603, 7
        %v606 = vshll.u32 %v539, 16
        %v608 = vor.u32 %v605, %v606
        %v609 = vrot.slane %v605, 4
        %v611 = vshrl.u32 %v540, 16
        %v613 = vrot.slane %v611, 7
        %v614 = vshll.u32 %v540, 16
        %v616 = vor.u32 %v613, %v614
        %v617 = vsel %vm550, %v609, %v616
        %v618 = vrot.slane %v613, 4
        %v620 = vshrl.u32 %v541, 16
        %v622 = vrot.slane %v620, 7
        %v623 = vshll.u32 %v541, 16
        %v625 = vor.u32 %v622, %v623
        %v626 = vrot.slane %v622, 4
        %v628 = vshrl.u32 %v542, 16
        %v630 = vrot.slane %v628, 7
        %v631 = vshll.u32 %v542, 16
        %v633 = vor.u32 %v630, %v631
        %v634 = vsel %vm550, %v626, %v633
        %v635 = vrot.slane %v630, 4
        %v637 = vshrl.u32 %v543, 16
        %v639 = vrot.slane %v637, 7
        %v640 = vshll.u32 %v543, 16
        %v642 = vor.u32 %v639, %v640
        %v643 = vrot.slane %v639, 4
        %v645 = vshrl.u32 %v544, 16
        %v647 = vrot.slane %v645, 7
        %v648 = vshll.u32 %v544, 16
        %v650 = vor.u32 %v647, %v648
        %v651 = vsel %vm550, %v643, %v650
        %v652 = vrot.slane %v647, 4
        %v654 = vshrl.u32 %v545, 16
        %v656 = vrot.slane %v654, 7
        %v657 = vshll.u32 %v545, 16
        %v659 = vor.u32 %v656, %v657
        %v660 = vrot.slane %v656, 4
        %v662 = vshrl.u32 %v546, 16
        %v664 = vrot.slane %v662, 7
        %v665 = vshll.u32 %v546, 16
        %v667 = vor.u32 %v664, %v665
        %v668 = vsel %vm550, %v660, %v667
        %v669 = vrot.slane %v664, 4
        %v671 = vshrl.u32 %v547, 16
        %v673 = vrot.slane %v671, 7
        %v674 = vshll.u32 %v547, 16
        %v676 = vor.u32 %v673, %v674
        %v677 = vrot.slane %v673, 4
        %v679 = vshrl.u32 %v548, 16
        %v681 = vrot.slane %v679, 7
        %v682 = vshll.u32 %v548, 16
        %v684 = vor.u32 %v681, %v682
        %v685 = vsel %vm550, %v677, %v684
        %v686 = vrot.slane %v681, 4
        %s711 = scalar_lea.vmem [#allocation2], 12
        %vm712 = vcmask 257024
        %vm713 = vmand %vm712, %vm326
        %v714 = vld [vmem:[%s711] sm:$0xf]
        %v715 = vsel %vm713, %v557, %v714
        %716 = vst [vmem:[%s711] sm:$0xf] %v715
        %vm717 = vcmask 257024
        %718 = vst.msk [vmem:[%s711 + $0x4] sm:$0xf] %vm717, %v566
        %v719 = vld [vmem:[%s711 + $0x8] sm:$0x1]
        %v720 = vsel %vm295, %v567, %v719
        %721 = vst [vmem:[%s711 + $0x8] sm:$0x1] %v720
        %v722 = vld [vmem:[%s711 + $0xc] sm:$0xf]
        %v723 = vsel %vm713, %v574, %v722
        %724 = vst [vmem:[%s711 + $0xc] sm:$0xf] %v723
        %725 = vst.msk [vmem:[%s711 + $0x10] sm:$0xf] %vm717, %v583
        %v726 = vld [vmem:[%s711 + $0x14] sm:$0x1]
        %v727 = vsel %vm295, %v584, %v726
        %728 = vst [vmem:[%s711 + $0x14] sm:$0x1] %v727
        %v729 = vld [vmem:[%s711 + $0x18] sm:$0xf]
        %v730 = vsel %vm713, %v591, %v729
        %731 = vst [vmem:[%s711 + $0x18] sm:$0xf] %v730
        %732 = vst.msk [vmem:[%s711 + $0x1c] sm:$0xf] %vm717, %v600
        %v733 = vld [vmem:[%s711 + $0x20] sm:$0x1]
        %v734 = vsel %vm295, %v601, %v733
        %735 = vst [vmem:[%s711 + $0x20] sm:$0x1] %v734
        %v736 = vld [vmem:[%s711 + $0x24] sm:$0xf]
        %v737 = vsel %vm713, %v608, %v736
        %738 = vst [vmem:[%s711 + $0x24] sm:$0xf] %v737
        %739 = vst.msk [vmem:[%s711 + $0x28] sm:$0xf] %vm717, %v617
        %v740 = vld [vmem:[%s711 + $0x2c] sm:$0x1]
        %v741 = vsel %vm295, %v618, %v740
        %742 = vst [vmem:[%s711 + $0x2c] sm:$0x1] %v741
        %v743 = vld [vmem:[%s711 + $0x30] sm:$0xf]
        %v744 = vsel %vm713, %v625, %v743
        %745 = vst [vmem:[%s711 + $0x30] sm:$0xf] %v744
        %746 = vst.msk [vmem:[%s711 + $0x34] sm:$0xf] %vm717, %v634
        %v747 = vld [vmem:[%s711 + $0x38] sm:$0x1]
        %v748 = vsel %vm295, %v635, %v747
        %749 = vst [vmem:[%s711 + $0x38] sm:$0x1] %v748
        %v750 = vld [vmem:[%s711 + $0x3c] sm:$0xf]
        %v751 = vsel %vm713, %v642, %v750
        %752 = vst [vmem:[%s711 + $0x3c] sm:$0xf] %v751
        %753 = vst.msk [vmem:[%s711 + $0x40] sm:$0xf] %vm717, %v651
        %v754 = vld [vmem:[%s711 + $0x44] sm:$0x1]
        %v755 = vsel %vm295, %v652, %v754
        %756 = vst [vmem:[%s711 + $0x44] sm:$0x1] %v755
        %v757 = vld [vmem:[%s711 + $0x48] sm:$0xf]
        %v758 = vsel %vm713, %v659, %v757
        %759 = vst [vmem:[%s711 + $0x48] sm:$0xf] %v758
        %760 = vst.msk [vmem:[%s711 + $0x4c] sm:$0xf] %vm717, %v668
        %v761 = vld [vmem:[%s711 + $0x50] sm:$0x1]
        %v762 = vsel %vm295, %v669, %v761
        %763 = vst [vmem:[%s711 + $0x50] sm:$0x1] %v762
        %v764 = vld [vmem:[%s711 + $0x54] sm:$0xf]
        %v765 = vsel %vm713, %v676, %v764
        %766 = vst [vmem:[%s711 + $0x54] sm:$0xf] %v765
        %767 = vst.msk [vmem:[%s711 + $0x58] sm:$0xf] %vm717, %v685
        %v768 = vld [vmem:[%s711 + $0x5c] sm:$0x1]
        %v769 = vsel %vm295, %v686, %v768
        %770 = vst [vmem:[%s711 + $0x5c] sm:$0x1] %v769
        %p771 = scmp.eq.s32.totalorder %s26, 0
        // Predicated region
        $region49: #{tpu_custom_call.1} parent=47 // pred_check
          %p772 = pneg %p771
        $region50: #{tpu_custom_call.1} parent=47 // pred_check_branch
          %774 = sbr.rel (%p772) target = $region52
        $region51: #{tpu_custom_call.1} parent=47 // pred_region
          %v775 = vld [vmem:[#allocation2] sm:$0xf]
          %v776 = vsel %vm713, 0, %v775
          %777 = vst [vmem:[#allocation2] sm:$0xf] %v776
          %778 = vst.msk [vmem:[#allocation2 + $0x4] sm:$0xf] %vm717, 0
          %v779 = vld [vmem:[#allocation2 + $0x8] sm:$0x1]
          %v780 = vsel %vm295, 0, %v779
          %781 = vst [vmem:[#allocation2 + $0x8] sm:$0x1] %v780
        $region52: #{tpu_custom_call.1} parent=47 // pred_fallthru
          _
        %p782 = scmp.gt.s32.totalorder %s26, 0
        // Predicated region
        $region53: #{tpu_custom_call.1} parent=47 // pred_check
          %p783 = pneg %p782
        $region54: #{tpu_custom_call.1} parent=47 // pred_check_branch
          %785 = sbr.rel (%p783) target = $region56
        $region55: #{tpu_custom_call.1} parent=47 // pred_region
          %s786 = ssub.s32 %s292, 16
          %s787 = sshra.s32 %s786, 3
          %s788 = sand.u32 %s786, 7
          %s789 = smul.addr %s787, 4
          %s790 = scalar_lea.vmem %s290, %s789
          %v791 = vld [vmem:[%s790] sm:$0xf]
          %v792 = vld [vmem:[%s790 + $0x4] sm:$0xf]
          %v793 = vld [vmem:[%s1] sm:$0xf]
          %v794 = vld [vmem:[%s2] sm:$0x1]
          %v796 = vperm.slane %v794, 0
          %v800 = vunpack.c.l.b16 %v791
          %v801 = vunpack.c.l.b16 %v792
          %v802 = vpack.c.b16 %v801, %v800
          %v804 = vsel %vm423, %v802, 0
          %v807 = vsel %vm448, %v793, 0
          %809 = vmatpush.bf16.msra.mxu0 0
          %810 = vmatpush.bf16.msra.mxu0 0
          %811 = vmatpush.bf16.msra.mxu0 0
          %812 = vmatpush.bf16.msra.mxu0 0
          %813 = vmatpush.bf16.msra.mxu0 0
          %814 = vmatpush.bf16.msra.mxu0 0
          %815 = vmatpush.bf16.msra.mxu0 0
          %816 = vmatpush.bf16.msra.mxu0 %v807
          %817 = vmatmul.bf16.gmra.mxu0 %v804
          %v818 = vpop.f32.mrf.mxu0
          %v819 = vadd.f32 %v796, %v818
          %v820 = vpop.f32.mrf.mxu0
          %v821 = vadd.f32 %v796, %v820
          %822 = vdwg.mxu0
          %v823 = vmax.f32 %v819, 0.0
          %v824 = vmax.f32 %v821, 0.0
          %v825 = vmin.f32 %v823, 6.0
          %v826 = vmin.f32 %v824, 6.0
          %v827 = vpack.c.bf16 %v825, %v825
          %v828 = vpack.c.bf16 %v826, %v826
          %v830 = vshrl.u32 %v827, 16
          %v832 = vrot.slane %v830, 7
          %v833 = vshll.u32 %v827, 16
          %v835 = vor.u32 %v832, %v833
          %v836 = vrot.slane %v832, 4
          %v838 = vshrl.u32 %v828, 16
          %v840 = vrot.slane %v838, 7
          %v841 = vshll.u32 %v828, 16
          %v843 = vor.u32 %v840, %v841
          %v844 = vsel %vm550, %v836, %v843
          %v845 = vrot.slane %v840, 4
          %v849 = vld [vmem:[#allocation2] sm:$0xf]
          %v850 = vsel %vm713, %v835, %v849
          %851 = vst [vmem:[#allocation2] sm:$0xf] %v850
          %852 = vst.msk [vmem:[#allocation2 + $0x4] sm:$0xf] %vm717, %v844
          %v853 = vld [vmem:[#allocation2 + $0x8] sm:$0x1]
          %v854 = vsel %vm295, %v845, %v853
          %855 = vst [vmem:[#allocation2 + $0x8] sm:$0x1] %v854
        $region56: #{tpu_custom_call.1} parent=47 // pred_fallthru
          _
        %p856 = scmp.eq.s32.totalorder %s26, 1
        // Predicated region
        $region57: #{tpu_custom_call.1} parent=47 // pred_check
          %p857 = pneg %p856
        $region58: #{tpu_custom_call.1} parent=47 // pred_check_branch
          %859 = sbr.rel (%p857) target = $region60
        $region59: #{tpu_custom_call.1} parent=47 // pred_region
          %s860 = scalar_lea.vmem [#allocation2], 108
          %v861 = vld [vmem:[%s860] sm:$0xf]
          %v862 = vsel %vm713, 0, %v861
          %863 = vst [vmem:[%s860] sm:$0xf] %v862
          %864 = vst.msk [vmem:[%s860 + $0x4] sm:$0xf] %vm717, 0
          %v865 = vld [vmem:[%s860 + $0x8] sm:$0x1]
          %v866 = vsel %vm295, 0, %v865
          %867 = vst [vmem:[%s860 + $0x8] sm:$0x1] %v866
        $region60: #{tpu_custom_call.1} parent=47 // pred_fallthru
          _
        %p868 = scmp.lt.s32.totalorder %s26, 1
        // Predicated region
        $region61: #{tpu_custom_call.1} parent=47 // pred_check
          %p869 = pneg %p868
        $region62: #{tpu_custom_call.1} parent=47 // pred_check_branch
          %871 = sbr.rel (%p869) target = $region64
        $region63: #{tpu_custom_call.1} parent=47 // pred_region
          %s872 = sadd.s32 %s292, 128
          %s873 = sshra.s32 %s872, 3
          %s874 = sand.u32 %s872, 7
          %s875 = smul.addr %s873, 4
          %s876 = scalar_lea.vmem %s290, %s875
          %v877 = vld [vmem:[%s876] sm:$0xf]
          %v878 = vld [vmem:[%s876 + $0x4] sm:$0xf]
          %v879 = vld [vmem:[%s1] sm:$0xf]
          %v880 = vld [vmem:[%s2] sm:$0x1]
          %v882 = vperm.slane %v880, 0
          %v886 = vunpack.c.l.b16 %v877
          %v887 = vunpack.c.l.b16 %v878
          %v888 = vpack.c.b16 %v887, %v886
          %v890 = vsel %vm423, %v888, 0
          %v893 = vsel %vm448, %v879, 0
          %895 = vmatpush.bf16.msra.mxu0 0
          %896 = vmatpush.bf16.msra.mxu0 0
          %897 = vmatpush.bf16.msra.mxu0 0
          %898 = vmatpush.bf16.msra.mxu0 0
          %899 = vmatpush.bf16.msra.mxu0 0
          %900 = vmatpush.bf16.msra.mxu0 0
          %901 = vmatpush.bf16.msra.mxu0 0
          %902 = vmatpush.bf16.msra.mxu0 %v893
          %903 = vmatmul.bf16.gmra.mxu0 %v890
          %v904 = vpop.f32.mrf.mxu0
          %v905 = vadd.f32 %v882, %v904
          %v906 = vpop.f32.mrf.mxu0
          %v907 = vadd.f32 %v882, %v906
          %908 = vdwg.mxu0
          %v909 = vmax.f32 %v905, 0.0
          %v910 = vmax.f32 %v907, 0.0
          %v911 = vmin.f32 %v909, 6.0
          %v912 = vmin.f32 %v910, 6.0
          %v913 = vpack.c.bf16 %v911, %v911
          %v914 = vpack.c.bf16 %v912, %v912
          %v916 = vshrl.u32 %v913, 16
          %v918 = vrot.slane %v916, 7
          %v919 = vshll.u32 %v913, 16
          %v921 = vor.u32 %v918, %v919
          %v922 = vrot.slane %v918, 4
          %v924 = vshrl.u32 %v914, 16
          %v926 = vrot.slane %v924, 7
          %v927 = vshll.u32 %v914, 16
          %v929 = vor.u32 %v926, %v927
          %v930 = vsel %vm550, %v922, %v929
          %v931 = vrot.slane %v926, 4
          %s935 = scalar_lea.vmem [#allocation2], 108
          %v936 = vld [vmem:[%s935] sm:$0xf]
          %v937 = vsel %vm713, %v921, %v936
          %938 = vst [vmem:[%s935] sm:$0xf] %v937
          %939 = vst.msk [vmem:[%s935 + $0x4] sm:$0xf] %vm717, %v930
          %v940 = vld [vmem:[%s935 + $0x8] sm:$0x1]
          %v941 = vsel %vm295, %v931, %v940
          %942 = vst [vmem:[%s935 + $0x8] sm:$0x1] %v941
        $region64: #{tpu_custom_call.1} parent=47 // pred_fallthru
          _
        %v943 = vld [vmem:[%s3] sm:$0x7]
        %v944 = vld [vmem:[%s3 + $0x4] sm:$0x7]
        %v945 = vld [vmem:[%s3 + $0x8] sm:$0x7]
        %v946 = vld [vmem:[#allocation2] sm:$0xf]
        %v947 = vld [vmem:[#allocation2 + $0x4] sm:$0xf]
        %v948 = vld [vmem:[#allocation2 + $0xc] sm:$0xf]
        %v949 = vld [vmem:[#allocation2 + $0x10] sm:$0xf]
        %v950 = vld [vmem:[#allocation2 + $0x18] sm:$0xf]
        %v951 = vld [vmem:[#allocation2 + $0x1c] sm:$0xf]
        %v952 = vld [vmem:[#allocation2 + $0x24] sm:$0xf]
        %v953 = vld [vmem:[#allocation2 + $0x28] sm:$0xf]
        %v954 = vld [vmem:[#allocation2 + $0x30] sm:$0xf]
        %v955 = vld [vmem:[#allocation2 + $0x34] sm:$0xf]
        %v956 = vld [vmem:[#allocation2 + $0x3c] sm:$0xf]
        %v957 = vld [vmem:[#allocation2 + $0x40] sm:$0xf]
        %v958 = vld [vmem:[#allocation2 + $0x48] sm:$0xf]
        %v959 = vld [vmem:[#allocation2 + $0x4c] sm:$0xf]
        %v960 = vld [vmem:[#allocation2 + $0x54] sm:$0xf]
        %v961 = vld [vmem:[#allocation2 + $0x58] sm:$0xf]
        %v962 = vunpack.c.l.bf16 %v946
        %v963 = vunpack.c.l.bf16 %v947
        %v964 = vunpack.c.l.bf16 %v948
        %v965 = vunpack.c.l.bf16 %v949
        %v966 = vunpack.c.l.bf16 %v950
        %v967 = vunpack.c.l.bf16 %v951
        %v968 = vunpack.c.l.bf16 %v952
        %v969 = vunpack.c.l.bf16 %v953
        %v970 = vunpack.c.l.bf16 %v954
        %v971 = vunpack.c.l.bf16 %v955
        %v972 = vunpack.c.l.bf16 %v956
        %v973 = vunpack.c.l.bf16 %v957
        %v974 = vunpack.c.l.bf16 %v958
        %v975 = vunpack.c.l.bf16 %v959
        %v976 = vunpack.c.l.bf16 %v960
        %v977 = vunpack.c.l.bf16 %v961
        %v978 = vperm.slane %v943, 0
        %v979 = vmul.f32 %v962, %v978
        %v980 = vmul.f32 %v963, %v978
        %v981 = vmul.f32 %v964, %v978
        %v982 = vmul.f32 %v965, %v978
        %v983 = vmul.f32 %v966, %v978
        %v984 = vmul.f32 %v967, %v978
        %v985 = vmul.f32 %v968, %v978
        %v986 = vmul.f32 %v969, %v978
        %v987 = vmul.f32 %v970, %v978
        %v988 = vmul.f32 %v971, %v978
        %v989 = vmul.f32 %v972, %v978
        %v990 = vmul.f32 %v973, %v978
        %v991 = vmul.f32 %v974, %v978
        %v992 = vmul.f32 %v975, %v978
        %v993 = vmul.f32 %v976, %v978
        %v994 = vmul.f32 %v977, %v978
        %v995 = vadd.f32 %v979, 0.0
        %v996 = vadd.f32 %v980, 0.0
        %v997 = vadd.f32 %v981, 0.0
        %v998 = vadd.f32 %v982, 0.0
        %v999 = vadd.f32 %v983, 0.0
        %v1000 = vadd.f32 %v984, 0.0
        %v1001 = vadd.f32 %v985, 0.0
        %v1002 = vadd.f32 %v986, 0.0
        %v1003 = vadd.f32 %v987, 0.0
        %v1004 = vadd.f32 %v988, 0.0
        %v1005 = vadd.f32 %v989, 0.0
        %v1006 = vadd.f32 %v990, 0.0
        %v1007 = vadd.f32 %v991, 0.0
        %v1008 = vadd.f32 %v992, 0.0
        %v1009 = vadd.f32 %v993, 0.0
        %v1010 = vadd.f32 %v994, 0.0
        %v1011 = vld [vmem:[#allocation2 + $0x8] sm:$0x1]
        %v1012 = vld [vmem:[#allocation2 + $0x14] sm:$0x1]
        %v1013 = vld [vmem:[#allocation2 + $0x20] sm:$0x1]
        %v1014 = vld [vmem:[#allocation2 + $0x2c] sm:$0x1]
        %v1015 = vld [vmem:[#allocation2 + $0x38] sm:$0x1]
        %v1016 = vld [vmem:[#allocation2 + $0x44] sm:$0x1]
        %v1017 = vld [vmem:[#allocation2 + $0x50] sm:$0x1]
        %v1018 = vld [vmem:[#allocation2 + $0x5c] sm:$0x1]
        %v1019 = vunpack.c.l.bf16 %v1011
        %v1020 = vunpack.c.l.bf16 %v1012
        %v1021 = vunpack.c.l.bf16 %v1013
        %v1022 = vunpack.c.l.bf16 %v1014
        %v1023 = vunpack.c.l.bf16 %v1015
        %v1024 = vunpack.c.l.bf16 %v1016
        %v1025 = vunpack.c.l.bf16 %v1017
        %v1026 = vunpack.c.l.bf16 %v1018
        %v1027 = vperm.slane %v943, 1
        %v1028 = vmul.f32 %v962, %v1027
        %v1029 = vmul.f32 %v963, %v1027
        %v1030 = vmul.f32 %v1019, %v1027
        %v1031 = vmul.f32 %v964, %v1027
        %v1032 = vmul.f32 %v965, %v1027
        %v1033 = vmul.f32 %v1020, %v1027
        %v1034 = vmul.f32 %v966, %v1027
        %v1035 = vmul.f32 %v967, %v1027
        %v1036 = vmul.f32 %v1021, %v1027
        %v1037 = vmul.f32 %v968, %v1027
        %v1038 = vmul.f32 %v969, %v1027
        %v1039 = vmul.f32 %v1022, %v1027
        %v1040 = vmul.f32 %v970, %v1027
        %v1041 = vmul.f32 %v971, %v1027
        %v1042 = vmul.f32 %v1023, %v1027
        %v1043 = vmul.f32 %v972, %v1027
        %v1044 = vmul.f32 %v973, %v1027
        %v1045 = vmul.f32 %v1024, %v1027
        %v1046 = vmul.f32 %v974, %v1027
        %v1047 = vmul.f32 %v975, %v1027
        %v1048 = vmul.f32 %v1025, %v1027
        %v1049 = vmul.f32 %v976, %v1027
        %v1050 = vmul.f32 %v977, %v1027
        %v1051 = vmul.f32 %v1026, %v1027
        %vm1076 = vcmask 1046528
        %v1077 = vrot.slane %v1028, 1
        %v1078 = vrot.slane %v1029, 1
        %v1079 = vsel %vm1076, %v1077, %v1078
        %v1080 = vrot.slane %v1030, 1
        %v1081 = vsel %vm1076, %v1078, %v1080
        %v1082 = vrot.slane %v1031, 1
        %v1083 = vrot.slane %v1032, 1
        %v1084 = vsel %vm1076, %v1082, %v1083
        %v1085 = vrot.slane %v1033, 1
        %v1086 = vsel %vm1076, %v1083, %v1085
        %v1087 = vrot.slane %v1034, 1
        %v1088 = vrot.slane %v1035, 1
        %v1089 = vsel %vm1076, %v1087, %v1088
        %v1090 = vrot.slane %v1036, 1
        %v1091 = vsel %vm1076, %v1088, %v1090
        %v1092 = vrot.slane %v1037, 1
        %v1093 = vrot.slane %v1038, 1
        %v1094 = vsel %vm1076, %v1092, %v1093
        %v1095 = vrot.slane %v1039, 1
        %v1096 = vsel %vm1076, %v1093, %v1095
        %v1097 = vrot.slane %v1040, 1
        %v1098 = vrot.slane %v1041, 1
        %v1099 = vsel %vm1076, %v1097, %v1098
        %v1100 = vrot.slane %v1042, 1
        %v1101 = vsel %vm1076, %v1098, %v1100
        %v1102 = vrot.slane %v1043, 1
        %v1103 = vrot.slane %v1044, 1
        %v1104 = vsel %vm1076, %v1102, %v1103
        %v1105 = vrot.slane %v1045, 1
        %v1106 = vsel %vm1076, %v1103, %v1105
        %v1107 = vrot.slane %v1046, 1
        %v1108 = vrot.slane %v1047, 1
        %v1109 = vsel %vm1076, %v1107, %v1108
        %v1110 = vrot.slane %v1048, 1
        %v1111 = vsel %vm1076, %v1108, %v1110
        %v1112 = vrot.slane %v1049, 1
        %v1113 = vrot.slane %v1050, 1
        %v1114 = vsel %vm1076, %v1112, %v1113
        %v1115 = vrot.slane %v1051, 1
        %v1116 = vsel %vm1076, %v1113, %v1115
        %v1133 = vadd.f32 %v995, %v1079
        %v1134 = vadd.f32 %v996, %v1081
        %v1135 = vadd.f32 %v997, %v1084
        %v1136 = vadd.f32 %v998, %v1086
        %v1137 = vadd.f32 %v999, %v1089
        %v1138 = vadd.f32 %v1000, %v1091
        %v1139 = vadd.f32 %v1001, %v1094
        %v1140 = vadd.f32 %v1002, %v1096
        %v1141 = vadd.f32 %v1003, %v1099
        %v1142 = vadd.f32 %v1004, %v1101
        %v1143 = vadd.f32 %v1005, %v1104
        %v1144 = vadd.f32 %v1006, %v1106
        %v1145 = vadd.f32 %v1007, %v1109
        %v1146 = vadd.f32 %v1008, %v1111
        %v1147 = vadd.f32 %v1009, %v1114
        %v1148 = vadd.f32 %v1010, %v1116
        %v1149 = vld [vmem:[#allocation2] sm:$0xe]
        %v1150 = vld [vmem:[#allocation2 + $0xc] sm:$0xe]
        %v1151 = vld [vmem:[#allocation2 + $0x18] sm:$0xe]
        %v1152 = vld [vmem:[#allocation2 + $0x24] sm:$0xe]
        %v1153 = vld [vmem:[#allocation2 + $0x30] sm:$0xe]
        %v1154 = vld [vmem:[#allocation2 + $0x3c] sm:$0xe]
        %v1155 = vld [vmem:[#allocation2 + $0x48] sm:$0xe]
        %v1156 = vld [vmem:[#allocation2 + $0x54] sm:$0xe]
        %v1157 = vunpack.c.l.bf16 %v1149
        %v1158 = vunpack.c.l.bf16 %v1150
        %v1159 = vunpack.c.l.bf16 %v1151
        %v1160 = vunpack.c.l.bf16 %v1152
        %v1161 = vunpack.c.l.bf16 %v1153
        %v1162 = vunpack.c.l.bf16 %v1154
        %v1163 = vunpack.c.l.bf16 %v1155
        %v1164 = vunpack.c.l.bf16 %v1156
        %v1165 = vperm.slane %v943, 2
        %v1166 = vmul.f32 %v1157, %v1165
        %v1167 = vmul.f32 %v963, %v1165
        %v1168 = vmul.f32 %v1019, %v1165
        %v1169 = vmul.f32 %v1158, %v1165
        %v1170 = vmul.f32 %v965, %v1165
        %v1171 = vmul.f32 %v1020, %v1165
        %v1172 = vmul.f32 %v1159, %v1165
        %v1173 = vmul.f32 %v967, %v1165
        %v1174 = vmul.f32 %v1021, %v1165
        %v1175 = vmul.f32 %v1160, %v1165
        %v1176 = vmul.f32 %v969, %v1165
        %v1177 = vmul.f32 %v1022, %v1165
        %v1178 = vmul.f32 %v1161, %v1165
        %v1179 = vmul.f32 %v971, %v1165
        %v1180 = vmul.f32 %v1023, %v1165
        %v1181 = vmul.f32 %v1162, %v1165
        %v1182 = vmul.f32 %v973, %v1165
        %v1183 = vmul.f32 %v1024, %v1165
        %v1184 = vmul.f32 %v1163, %v1165
        %v1185 = vmul.f32 %v975, %v1165
        %v1186 = vmul.f32 %v1025, %v1165
        %v1187 = vmul.f32 %v1164, %v1165
        %v1188 = vmul.f32 %v977, %v1165
        %v1189 = vmul.f32 %v1026, %v1165
        %vm1214 = vcmask 1045504
        %v1215 = vrot.slane %v1166, 2
        %v1216 = vrot.slane %v1167, 2
        %v1217 = vsel %vm1214, %v1215, %v1216
        %v1218 = vrot.slane %v1168, 2
        %v1219 = vsel %vm1214, %v1216, %v1218
        %v1220 = vrot.slane %v1169, 2
        %v1221 = vrot.slane %v1170, 2
        %v1222 = vsel %vm1214, %v1220, %v1221
        %v1223 = vrot.slane %v1171, 2
        %v1224 = vsel %vm1214, %v1221, %v1223
        %v1225 = vrot.slane %v1172, 2
        %v1226 = vrot.slane %v1173, 2
        %v1227 = vsel %vm1214, %v1225, %v1226
        %v1228 = vrot.slane %v1174, 2
        %v1229 = vsel %vm1214, %v1226, %v1228
        %v1230 = vrot.slane %v1175, 2
        %v1231 = vrot.slane %v1176, 2
        %v1232 = vsel %vm1214, %v1230, %v1231
        %v1233 = vrot.slane %v1177, 2
        %v1234 = vsel %vm1214, %v1231, %v1233
        %v1235 = vrot.slane %v1178, 2
        %v1236 = vrot.slane %v1179, 2
        %v1237 = vsel %vm1214, %v1235, %v1236
        %v1238 = vrot.slane %v1180, 2
        %v1239 = vsel %vm1214, %v1236, %v1238
        %v1240 = vrot.slane %v1181, 2
        %v1241 = vrot.slane %v1182, 2
        %v1242 = vsel %vm1214, %v1240, %v1241
        %v1243 = vrot.slane %v1183, 2
        %v1244 = vsel %vm1214, %v1241, %v1243
        %v1245 = vrot.slane %v1184, 2
        %v1246 = vrot.slane %v1185, 2
        %v1247 = vsel %vm1214, %v1245, %v1246
        %v1248 = vrot.slane %v1186, 2
        %v1249 = vsel %vm1214, %v1246, %v1248
        %v1250 = vrot.slane %v1187, 2
        %v1251 = vrot.slane %v1188, 2
        %v1252 = vsel %vm1214, %v1250, %v1251
        %v1253 = vrot.slane %v1189, 2
        %v1254 = vsel %vm1214, %v1251, %v1253
        %v1271 = vadd.f32 %v1133, %v1217
        %v1272 = vadd.f32 %v1134, %v1219
        %v1273 = vadd.f32 %v1135, %v1222
        %v1274 = vadd.f32 %v1136, %v1224
        %v1275 = vadd.f32 %v1137, %v1227
        %v1276 = vadd.f32 %v1138, %v1229
        %v1277 = vadd.f32 %v1139, %v1232
        %v1278 = vadd.f32 %v1140, %v1234
        %v1279 = vadd.f32 %v1141, %v1237
        %v1280 = vadd.f32 %v1142, %v1239
        %v1281 = vadd.f32 %v1143, %v1242
        %v1282 = vadd.f32 %v1144, %v1244
        %v1283 = vadd.f32 %v1145, %v1247
        %v1284 = vadd.f32 %v1146, %v1249
        %v1285 = vadd.f32 %v1147, %v1252
        %v1286 = vadd.f32 %v1148, %v1254
        %v1287 = vld [vmem:[%s711] sm:$0xf]
        %v1288 = vld [vmem:[%s711 + $0x4] sm:$0xf]
        %v1289 = vld [vmem:[%s711 + $0xc] sm:$0xf]
        %v1290 = vld [vmem:[%s711 + $0x10] sm:$0xf]
        %v1291 = vld [vmem:[%s711 + $0x18] sm:$0xf]
        %v1292 = vld [vmem:[%s711 + $0x1c] sm:$0xf]
        %v1293 = vld [vmem:[%s711 + $0x24] sm:$0xf]
        %v1294 = vld [vmem:[%s711 + $0x28] sm:$0xf]
        %v1295 = vld [vmem:[%s711 + $0x30] sm:$0xf]
        %v1296 = vld [vmem:[%s711 + $0x34] sm:$0xf]
        %v1297 = vld [vmem:[%s711 + $0x3c] sm:$0xf]
        %v1298 = vld [vmem:[%s711 + $0x40] sm:$0xf]
        %v1299 = vld [vmem:[%s711 + $0x48] sm:$0xf]
        %v1300 = vld [vmem:[%s711 + $0x4c] sm:$0xf]
        %v1301 = vld [vmem:[%s711 + $0x54] sm:$0xf]
        %v1302 = vld [vmem:[%s711 + $0x58] sm:$0xf]
        %v1303 = vunpack.c.l.bf16 %v1287
        %v1304 = vunpack.c.l.bf16 %v1288
        %v1305 = vunpack.c.l.bf16 %v1289
        %v1306 = vunpack.c.l.bf16 %v1290
        %v1307 = vunpack.c.l.bf16 %v1291
        %v1308 = vunpack.c.l.bf16 %v1292
        %v1309 = vunpack.c.l.bf16 %v1293
        %v1310 = vunpack.c.l.bf16 %v1294
        %v1311 = vunpack.c.l.bf16 %v1295
        %v1312 = vunpack.c.l.bf16 %v1296
        %v1313 = vunpack.c.l.bf16 %v1297
        %v1314 = vunpack.c.l.bf16 %v1298
        %v1315 = vunpack.c.l.bf16 %v1299
        %v1316 = vunpack.c.l.bf16 %v1300
        %v1317 = vunpack.c.l.bf16 %v1301
        %v1318 = vunpack.c.l.bf16 %v1302
        %v1319 = vperm.slane %v944, 0
        %v1320 = vmul.f32 %v1303, %v1319
        %v1321 = vmul.f32 %v1304, %v1319
        %v1322 = vmul.f32 %v1305, %v1319
        %v1323 = vmul.f32 %v1306, %v1319
        %v1324 = vmul.f32 %v1307, %v1319
        %v1325 = vmul.f32 %v1308, %v1319
        %v1326 = vmul.f32 %v1309, %v1319
        %v1327 = vmul.f32 %v1310, %v1319
        %v1328 = vmul.f32 %v1311, %v1319
        %v1329 = vmul.f32 %v1312, %v1319
        %v1330 = vmul.f32 %v1313, %v1319
        %v1331 = vmul.f32 %v1314, %v1319
        %v1332 = vmul.f32 %v1315, %v1319
        %v1333 = vmul.f32 %v1316, %v1319
        %v1334 = vmul.f32 %v1317, %v1319
        %v1335 = vmul.f32 %v1318, %v1319
        %v1336 = vadd.f32 %v1271, %v1320
        %v1337 = vadd.f32 %v1272, %v1321
        %v1338 = vadd.f32 %v1273, %v1322
        %v1339 = vadd.f32 %v1274, %v1323
        %v1340 = vadd.f32 %v1275, %v1324
        %v1341 = vadd.f32 %v1276, %v1325
        %v1342 = vadd.f32 %v1277, %v1326
        %v1343 = vadd.f32 %v1278, %v1327
        %v1344 = vadd.f32 %v1279, %v1328
        %v1345 = vadd.f32 %v1280, %v1329
        %v1346 = vadd.f32 %v1281, %v1330
        %v1347 = vadd.f32 %v1282, %v1331
        %v1348 = vadd.f32 %v1283, %v1332
        %v1349 = vadd.f32 %v1284, %v1333
        %v1350 = vadd.f32 %v1285, %v1334
        %v1351 = vadd.f32 %v1286, %v1335
        %v1352 = vld [vmem:[%s711 + $0x8] sm:$0x1]
        %v1353 = vld [vmem:[%s711 + $0x14] sm:$0x1]
        %v1354 = vld [vmem:[%s711 + $0x20] sm:$0x1]
        %v1355 = vld [vmem:[%s711 + $0x2c] sm:$0x1]
        %v1356 = vld [vmem:[%s711 + $0x38] sm:$0x1]
        %v1357 = vld [vmem:[%s711 + $0x44] sm:$0x1]
        %v1358 = vld [vmem:[%s711 + $0x50] sm:$0x1]
        %v1359 = vld [vmem:[%s711 + $0x5c] sm:$0x1]
        %v1360 = vunpack.c.l.bf16 %v1352
        %v1361 = vunpack.c.l.bf16 %v1353
        %v1362 = vunpack.c.l.bf16 %v1354
        %v1363 = vunpack.c.l.bf16 %v1355
        %v1364 = vunpack.c.l.bf16 %v1356
        %v1365 = vunpack.c.l.bf16 %v1357
        %v1366 = vunpack.c.l.bf16 %v1358
        %v1367 = vunpack.c.l.bf16 %v1359
        %v1368 = vperm.slane %v944, 1
        %v1369 = vmul.f32 %v1303, %v1368
        %v1370 = vmul.f32 %v1304, %v1368
        %v1371 = vmul.f32 %v1360, %v1368
        %v1372 = vmul.f32 %v1305, %v1368
        %v1373 = vmul.f32 %v1306, %v1368
        %v1374 = vmul.f32 %v1361, %v1368
        %v1375 = vmul.f32 %v1307, %v1368
        %v1376 = vmul.f32 %v1308, %v1368
        %v1377 = vmul.f32 %v1362, %v1368
        %v1378 = vmul.f32 %v1309, %v1368
        %v1379 = vmul.f32 %v1310, %v1368
        %v1380 = vmul.f32 %v1363, %v1368
        %v1381 = vmul.f32 %v1311, %v1368
        %v1382 = vmul.f32 %v1312, %v1368
        %v1383 = vmul.f32 %v1364, %v1368
        %v1384 = vmul.f32 %v1313, %v1368
        %v1385 = vmul.f32 %v1314, %v1368
        %v1386 = vmul.f32 %v1365, %v1368
        %v1387 = vmul.f32 %v1315, %v1368
        %v1388 = vmul.f32 %v1316, %v1368
        %v1389 = vmul.f32 %v1366, %v1368
        %v1390 = vmul.f32 %v1317, %v1368
        %v1391 = vmul.f32 %v1318, %v1368
        %v1392 = vmul.f32 %v1367, %v1368
        %v1417 = vrot.slane %v1369, 1
        %v1418 = vrot.slane %v1370, 1
        %v1419 = vsel %vm1076, %v1417, %v1418
        %v1420 = vrot.slane %v1371, 1
        %v1421 = vsel %vm1076, %v1418, %v1420
        %v1422 = vrot.slane %v1372, 1
        %v1423 = vrot.slane %v1373, 1
        %v1424 = vsel %vm1076, %v1422, %v1423
        %v1425 = vrot.slane %v1374, 1
        %v1426 = vsel %vm1076, %v1423, %v1425
        %v1427 = vrot.slane %v1375, 1
        %v1428 = vrot.slane %v1376, 1
        %v1429 = vsel %vm1076, %v1427, %v1428
        %v1430 = vrot.slane %v1377, 1
        %v1431 = vsel %vm1076, %v1428, %v1430
        %v1432 = vrot.slane %v1378, 1
        %v1433 = vrot.slane %v1379, 1
        %v1434 = vsel %vm1076, %v1432, %v1433
        %v1435 = vrot.slane %v1380, 1
        %v1436 = vsel %vm1076, %v1433, %v1435
        %v1437 = vrot.slane %v1381, 1
        %v1438 = vrot.slane %v1382, 1
        %v1439 = vsel %vm1076, %v1437, %v1438
        %v1440 = vrot.slane %v1383, 1
        %v1441 = vsel %vm1076, %v1438, %v1440
        %v1442 = vrot.slane %v1384, 1
        %v1443 = vrot.slane %v1385, 1
        %v1444 = vsel %vm1076, %v1442, %v1443
        %v1445 = vrot.slane %v1386, 1
        %v1446 = vsel %vm1076, %v1443, %v1445
        %v1447 = vrot.slane %v1387, 1
        %v1448 = vrot.slane %v1388, 1
        %v1449 = vsel %vm1076, %v1447, %v1448
        %v1450 = vrot.slane %v1389, 1
        %v1451 = vsel %vm1076, %v1448, %v1450
        %v1452 = vrot.slane %v1390, 1
        %v1453 = vrot.slane %v1391, 1
        %v1454 = vsel %vm1076, %v1452, %v1453
        %v1455 = vrot.slane %v1392, 1
        %v1456 = vsel %vm1076, %v1453, %v1455
        %v1473 = vadd.f32 %v1336, %v1419
        %v1474 = vadd.f32 %v1337, %v1421
        %v1475 = vadd.f32 %v1338, %v1424
        %v1476 = vadd.f32 %v1339, %v1426
        %v1477 = vadd.f32 %v1340, %v1429
        %v1478 = vadd.f32 %v1341, %v1431
        %v1479 = vadd.f32 %v1342, %v1434
        %v1480 = vadd.f32 %v1343, %v1436
        %v1481 = vadd.f32 %v1344, %v1439
        %v1482 = vadd.f32 %v1345, %v1441
        %v1483 = vadd.f32 %v1346, %v1444
        %v1484 = vadd.f32 %v1347, %v1446
        %v1485 = vadd.f32 %v1348, %v1449
        %v1486 = vadd.f32 %v1349, %v1451
        %v1487 = vadd.f32 %v1350, %v1454
        %v1488 = vadd.f32 %v1351, %v1456
        %v1489 = vld [vmem:[%s711] sm:$0xe]
        %v1490 = vld [vmem:[%s711 + $0xc] sm:$0xe]
        %v1491 = vld [vmem:[%s711 + $0x18] sm:$0xe]
        %v1492 = vld [vmem:[%s711 + $0x24] sm:$0xe]
        %v1493 = vld [vmem:[%s711 + $0x30] sm:$0xe]
        %v1494 = vld [vmem:[%s711 + $0x3c] sm:$0xe]
        %v1495 = vld [vmem:[%s711 + $0x48] sm:$0xe]
        %v1496 = vld [vmem:[%s711 + $0x54] sm:$0xe]
        %v1497 = vunpack.c.l.bf16 %v1489
        %v1498 = vunpack.c.l.bf16 %v1490
        %v1499 = vunpack.c.l.bf16 %v1491
        %v1500 = vunpack.c.l.bf16 %v1492
        %v1501 = vunpack.c.l.bf16 %v1493
        %v1502 = vunpack.c.l.bf16 %v1494
        %v1503 = vunpack.c.l.bf16 %v1495
        %v1504 = vunpack.c.l.bf16 %v1496
        %v1505 = vperm.slane %v944, 2
        %v1506 = vmul.f32 %v1497, %v1505
        %v1507 = vmul.f32 %v1304, %v1505
        %v1508 = vmul.f32 %v1360, %v1505
        %v1509 = vmul.f32 %v1498, %v1505
        %v1510 = vmul.f32 %v1306, %v1505
        %v1511 = vmul.f32 %v1361, %v1505
        %v1512 = vmul.f32 %v1499, %v1505
        %v1513 = vmul.f32 %v1308, %v1505
        %v1514 = vmul.f32 %v1362, %v1505
        %v1515 = vmul.f32 %v1500, %v1505
        %v1516 = vmul.f32 %v1310, %v1505
        %v1517 = vmul.f32 %v1363, %v1505
        %v1518 = vmul.f32 %v1501, %v1505
        %v1519 = vmul.f32 %v1312, %v1505
        %v1520 = vmul.f32 %v1364, %v1505
        %v1521 = vmul.f32 %v1502, %v1505
        %v1522 = vmul.f32 %v1314, %v1505
        %v1523 = vmul.f32 %v1365, %v1505
        %v1524 = vmul.f32 %v1503, %v1505
        %v1525 = vmul.f32 %v1316, %v1505
        %v1526 = vmul.f32 %v1366, %v1505
        %v1527 = vmul.f32 %v1504, %v1505
        %v1528 = vmul.f32 %v1318, %v1505
        %v1529 = vmul.f32 %v1367, %v1505
        %v1554 = vrot.slane %v1506, 2
        %v1555 = vrot.slane %v1507, 2
        %v1556 = vsel %vm1214, %v1554, %v1555
        %v1557 = vrot.slane %v1508, 2
        %v1558 = vsel %vm1214, %v1555, %v1557
        %v1559 = vrot.slane %v1509, 2
        %v1560 = vrot.slane %v1510, 2
        %v1561 = vsel %vm1214, %v1559, %v1560
        %v1562 = vrot.slane %v1511, 2
        %v1563 = vsel %vm1214, %v1560, %v1562
        %v1564 = vrot.slane %v1512, 2
        %v1565 = vrot.slane %v1513, 2
        %v1566 = vsel %vm1214, %v1564, %v1565
        %v1567 = vrot.slane %v1514, 2
        %v1568 = vsel %vm1214, %v1565, %v1567
        %v1569 = vrot.slane %v1515, 2
        %v1570 = vrot.slane %v1516, 2
        %v1571 = vsel %vm1214, %v1569, %v1570
        %v1572 = vrot.slane %v1517, 2
        %v1573 = vsel %vm1214, %v1570, %v1572
        %v1574 = vrot.slane %v1518, 2
        %v1575 = vrot.slane %v1519, 2
        %v1576 = vsel %vm1214, %v1574, %v1575
        %v1577 = vrot.slane %v1520, 2
        %v1578 = vsel %vm1214, %v1575, %v1577
        %v1579 = vrot.slane %v1521, 2
        %v1580 = vrot.slane %v1522, 2
        %v1581 = vsel %vm1214, %v1579, %v1580
        %v1582 = vrot.slane %v1523, 2
        %v1583 = vsel %vm1214, %v1580, %v1582
        %v1584 = vrot.slane %v1524, 2
        %v1585 = vrot.slane %v1525, 2
        %v1586 = vsel %vm1214, %v1584, %v1585
        %v1587 = vrot.slane %v1526, 2
        %v1588 = vsel %vm1214, %v1585, %v1587
        %v1589 = vrot.slane %v1527, 2
        %v1590 = vrot.slane %v1528, 2
        %v1591 = vsel %vm1214, %v1589, %v1590
        %v1592 = vrot.slane %v1529, 2
        %v1593 = vsel %vm1214, %v1590, %v1592
        %v1610 = vadd.f32 %v1473, %v1556
        %v1611 = vadd.f32 %v1474, %v1558
        %v1612 = vadd.f32 %v1475, %v1561
        %v1613 = vadd.f32 %v1476, %v1563
        %v1614 = vadd.f32 %v1477, %v1566
        %v1615 = vadd.f32 %v1478, %v1568
        %v1616 = vadd.f32 %v1479, %v1571
        %v1617 = vadd.f32 %v1480, %v1573
        %v1618 = vadd.f32 %v1481, %v1576
        %v1619 = vadd.f32 %v1482, %v1578
        %v1620 = vadd.f32 %v1483, %v1581
        %v1621 = vadd.f32 %v1484, %v1583
        %v1622 = vadd.f32 %v1485, %v1586
        %v1623 = vadd.f32 %v1486, %v1588
        %v1624 = vadd.f32 %v1487, %v1591
        %v1625 = vadd.f32 %v1488, %v1593
        %s1626 = scalar_lea.vmem [#allocation2], 24
        %v1627 = vld [vmem:[%s1626] sm:$0xf]
        %v1628 = vld [vmem:[%s1626 + $0x4] sm:$0xf]
        %v1629 = vld [vmem:[%s1626 + $0xc] sm:$0xf]
        %v1630 = vld [vmem:[%s1626 + $0x10] sm:$0xf]
        %v1631 = vld [vmem:[%s1626 + $0x18] sm:$0xf]
        %v1632 = vld [vmem:[%s1626 + $0x1c] sm:$0xf]
        %v1633 = vld [vmem:[%s1626 + $0x24] sm:$0xf]
        %v1634 = vld [vmem:[%s1626 + $0x28] sm:$0xf]
        %v1635 = vld [vmem:[%s1626 + $0x30] sm:$0xf]
        %v1636 = vld [vmem:[%s1626 + $0x34] sm:$0xf]
        %v1637 = vld [vmem:[%s1626 + $0x3c] sm:$0xf]
        %v1638 = vld [vmem:[%s1626 + $0x40] sm:$0xf]
        %v1639 = vld [vmem:[%s1626 + $0x48] sm:$0xf]
        %v1640 = vld [vmem:[%s1626 + $0x4c] sm:$0xf]
        %v1641 = vld [vmem:[%s1626 + $0x54] sm:$0xf]
        %v1642 = vld [vmem:[%s1626 + $0x58] sm:$0xf]
        %v1643 = vunpack.c.l.bf16 %v1627
        %v1644 = vunpack.c.l.bf16 %v1628
        %v1645 = vunpack.c.l.bf16 %v1629
        %v1646 = vunpack.c.l.bf16 %v1630
        %v1647 = vunpack.c.l.bf16 %v1631
        %v1648 = vunpack.c.l.bf16 %v1632
        %v1649 = vunpack.c.l.bf16 %v1633
        %v1650 = vunpack.c.l.bf16 %v1634
        %v1651 = vunpack.c.l.bf16 %v1635
        %v1652 = vunpack.c.l.bf16 %v1636
        %v1653 = vunpack.c.l.bf16 %v1637
        %v1654 = vunpack.c.l.bf16 %v1638
        %v1655 = vunpack.c.l.bf16 %v1639
        %v1656 = vunpack.c.l.bf16 %v1640
        %v1657 = vunpack.c.l.bf16 %v1641
        %v1658 = vunpack.c.l.bf16 %v1642
        %v1659 = vperm.slane %v945, 0
        %v1660 = vmul.f32 %v1643, %v1659
        %v1661 = vmul.f32 %v1644, %v1659
        %v1662 = vmul.f32 %v1645, %v1659
        %v1663 = vmul.f32 %v1646, %v1659
        %v1664 = vmul.f32 %v1647, %v1659
        %v1665 = vmul.f32 %v1648, %v1659
        %v1666 = vmul.f32 %v1649, %v1659
        %v1667 = vmul.f32 %v1650, %v1659
        %v1668 = vmul.f32 %v1651, %v1659
        %v1669 = vmul.f32 %v1652, %v1659
        %v1670 = vmul.f32 %v1653, %v1659
        %v1671 = vmul.f32 %v1654, %v1659
        %v1672 = vmul.f32 %v1655, %v1659
        %v1673 = vmul.f32 %v1656, %v1659
        %v1674 = vmul.f32 %v1657, %v1659
        %v1675 = vmul.f32 %v1658, %v1659
        %v1676 = vadd.f32 %v1610, %v1660
        %v1677 = vadd.f32 %v1611, %v1661
        %v1678 = vadd.f32 %v1612, %v1662
        %v1679 = vadd.f32 %v1613, %v1663
        %v1680 = vadd.f32 %v1614, %v1664
        %v1681 = vadd.f32 %v1615, %v1665
        %v1682 = vadd.f32 %v1616, %v1666
        %v1683 = vadd.f32 %v1617, %v1667
        %v1684 = vadd.f32 %v1618, %v1668
        %v1685 = vadd.f32 %v1619, %v1669
        %v1686 = vadd.f32 %v1620, %v1670
        %v1687 = vadd.f32 %v1621, %v1671
        %v1688 = vadd.f32 %v1622, %v1672
        %v1689 = vadd.f32 %v1623, %v1673
        %v1690 = vadd.f32 %v1624, %v1674
        %v1691 = vadd.f32 %v1625, %v1675
        %v1692 = vld [vmem:[%s1626 + $0x8] sm:$0x1]
        %v1693 = vld [vmem:[%s1626 + $0x14] sm:$0x1]
        %v1694 = vld [vmem:[%s1626 + $0x20] sm:$0x1]
        %v1695 = vld [vmem:[%s1626 + $0x2c] sm:$0x1]
        %v1696 = vld [vmem:[%s1626 + $0x38] sm:$0x1]
        %v1697 = vld [vmem:[%s1626 + $0x44] sm:$0x1]
        %v1698 = vld [vmem:[%s1626 + $0x50] sm:$0x1]
        %v1699 = vld [vmem:[%s1626 + $0x5c] sm:$0x1]
        %v1700 = vunpack.c.l.bf16 %v1692
        %v1701 = vunpack.c.l.bf16 %v1693
        %v1702 = vunpack.c.l.bf16 %v1694
        %v1703 = vunpack.c.l.bf16 %v1695
        %v1704 = vunpack.c.l.bf16 %v1696
        %v1705 = vunpack.c.l.bf16 %v1697
        %v1706 = vunpack.c.l.bf16 %v1698
        %v1707 = vunpack.c.l.bf16 %v1699
        %v1708 = vperm.slane %v945, 1
        %v1709 = vmul.f32 %v1643, %v1708
        %v1710 = vmul.f32 %v1644, %v1708
        %v1711 = vmul.f32 %v1700, %v1708
        %v1712 = vmul.f32 %v1645, %v1708
        %v1713 = vmul.f32 %v1646, %v1708
        %v1714 = vmul.f32 %v1701, %v1708
        %v1715 = vmul.f32 %v1647, %v1708
        %v1716 = vmul.f32 %v1648, %v1708
        %v1717 = vmul.f32 %v1702, %v1708
        %v1718 = vmul.f32 %v1649, %v1708
        %v1719 = vmul.f32 %v1650, %v1708
        %v1720 = vmul.f32 %v1703, %v1708
        %v1721 = vmul.f32 %v1651, %v1708
        %v1722 = vmul.f32 %v1652, %v1708
        %v1723 = vmul.f32 %v1704, %v1708
        %v1724 = vmul.f32 %v1653, %v1708
        %v1725 = vmul.f32 %v1654, %v1708
        %v1726 = vmul.f32 %v1705, %v1708
        %v1727 = vmul.f32 %v1655, %v1708
        %v1728 = vmul.f32 %v1656, %v1708
        %v1729 = vmul.f32 %v1706, %v1708
        %v1730 = vmul.f32 %v1657, %v1708
        %v1731 = vmul.f32 %v1658, %v1708
        %v1732 = vmul.f32 %v1707, %v1708
        %v1757 = vrot.slane %v1709, 1
        %v1758 = vrot.slane %v1710, 1
        %v1759 = vsel %vm1076, %v1757, %v1758
        %v1760 = vrot.slane %v1711, 1
        %v1761 = vsel %vm1076, %v1758, %v1760
        %v1762 = vrot.slane %v1712, 1
        %v1763 = vrot.slane %v1713, 1
        %v1764 = vsel %vm1076, %v1762, %v1763
        %v1765 = vrot.slane %v1714, 1
        %v1766 = vsel %vm1076, %v1763, %v1765
        %v1767 = vrot.slane %v1715, 1
        %v1768 = vrot.slane %v1716, 1
        %v1769 = vsel %vm1076, %v1767, %v1768
        %v1770 = vrot.slane %v1717, 1
        %v1771 = vsel %vm1076, %v1768, %v1770
        %v1772 = vrot.slane %v1718, 1
        %v1773 = vrot.slane %v1719, 1
        %v1774 = vsel %vm1076, %v1772, %v1773
        %v1775 = vrot.slane %v1720, 1
        %v1776 = vsel %vm1076, %v1773, %v1775
        %v1777 = vrot.slane %v1721, 1
        %v1778 = vrot.slane %v1722, 1
        %v1779 = vsel %vm1076, %v1777, %v1778
        %v1780 = vrot.slane %v1723, 1
        %v1781 = vsel %vm1076, %v1778, %v1780
        %v1782 = vrot.slane %v1724, 1
        %v1783 = vrot.slane %v1725, 1
        %v1784 = vsel %vm1076, %v1782, %v1783
        %v1785 = vrot.slane %v1726, 1
        %v1786 = vsel %vm1076, %v1783, %v1785
        %v1787 = vrot.slane %v1727, 1
        %v1788 = vrot.slane %v1728, 1
        %v1789 = vsel %vm1076, %v1787, %v1788
        %v1790 = vrot.slane %v1729, 1
        %v1791 = vsel %vm1076, %v1788, %v1790
        %v1792 = vrot.slane %v1730, 1
        %v1793 = vrot.slane %v1731, 1
        %v1794 = vsel %vm1076, %v1792, %v1793
        %v1795 = vrot.slane %v1732, 1
        %v1796 = vsel %vm1076, %v1793, %v1795
        %v1813 = vadd.f32 %v1676, %v1759
        %v1814 = vadd.f32 %v1677, %v1761
        %v1815 = vadd.f32 %v1678, %v1764
        %v1816 = vadd.f32 %v1679, %v1766
        %v1817 = vadd.f32 %v1680, %v1769
        %v1818 = vadd.f32 %v1681, %v1771
        %v1819 = vadd.f32 %v1682, %v1774
        %v1820 = vadd.f32 %v1683, %v1776
        %v1821 = vadd.f32 %v1684, %v1779
        %v1822 = vadd.f32 %v1685, %v1781
        %v1823 = vadd.f32 %v1686, %v1784
        %v1824 = vadd.f32 %v1687, %v1786
        %v1825 = vadd.f32 %v1688, %v1789
        %v1826 = vadd.f32 %v1689, %v1791
        %v1827 = vadd.f32 %v1690, %v1794
        %v1828 = vadd.f32 %v1691, %v1796
        %v1829 = vld [vmem:[%s1626] sm:$0xe]
        %v1830 = vld [vmem:[%s1626 + $0xc] sm:$0xe]
        %v1831 = vld [vmem:[%s1626 + $0x18] sm:$0xe]
        %v1832 = vld [vmem:[%s1626 + $0x24] sm:$0xe]
        %v1833 = vld [vmem:[%s1626 + $0x30] sm:$0xe]
        %v1834 = vld [vmem:[%s1626 + $0x3c] sm:$0xe]
        %v1835 = vld [vmem:[%s1626 + $0x48] sm:$0xe]
        %v1836 = vld [vmem:[%s1626 + $0x54] sm:$0xe]
        %v1837 = vunpack.c.l.bf16 %v1829
        %v1838 = vunpack.c.l.bf16 %v1830
        %v1839 = vunpack.c.l.bf16 %v1831
        %v1840 = vunpack.c.l.bf16 %v1832
        %v1841 = vunpack.c.l.bf16 %v1833
        %v1842 = vunpack.c.l.bf16 %v1834
        %v1843 = vunpack.c.l.bf16 %v1835
        %v1844 = vunpack.c.l.bf16 %v1836
        %v1845 = vperm.slane %v945, 2
        %v1846 = vmul.f32 %v1837, %v1845
        %v1847 = vmul.f32 %v1644, %v1845
        %v1848 = vmul.f32 %v1700, %v1845
        %v1849 = vmul.f32 %v1838, %v1845
        %v1850 = vmul.f32 %v1646, %v1845
        %v1851 = vmul.f32 %v1701, %v1845
        %v1852 = vmul.f32 %v1839, %v1845
        %v1853 = vmul.f32 %v1648, %v1845
        %v1854 = vmul.f32 %v1702, %v1845
        %v1855 = vmul.f32 %v1840, %v1845
        %v1856 = vmul.f32 %v1650, %v1845
        %v1857 = vmul.f32 %v1703, %v1845
        %v1858 = vmul.f32 %v1841, %v1845
        %v1859 = vmul.f32 %v1652, %v1845
        %v1860 = vmul.f32 %v1704, %v1845
        %v1861 = vmul.f32 %v1842, %v1845
        %v1862 = vmul.f32 %v1654, %v1845
        %v1863 = vmul.f32 %v1705, %v1845
        %v1864 = vmul.f32 %v1843, %v1845
        %v1865 = vmul.f32 %v1656, %v1845
        %v1866 = vmul.f32 %v1706, %v1845
        %v1867 = vmul.f32 %v1844, %v1845
        %v1868 = vmul.f32 %v1658, %v1845
        %v1869 = vmul.f32 %v1707, %v1845
        %v1894 = vrot.slane %v1846, 2
        %v1895 = vrot.slane %v1847, 2
        %v1896 = vsel %vm1214, %v1894, %v1895
        %v1897 = vrot.slane %v1848, 2
        %v1898 = vsel %vm1214, %v1895, %v1897
        %v1899 = vrot.slane %v1849, 2
        %v1900 = vrot.slane %v1850, 2
        %v1901 = vsel %vm1214, %v1899, %v1900
        %v1902 = vrot.slane %v1851, 2
        %v1903 = vsel %vm1214, %v1900, %v1902
        %v1904 = vrot.slane %v1852, 2
        %v1905 = vrot.slane %v1853, 2
        %v1906 = vsel %vm1214, %v1904, %v1905
        %v1907 = vrot.slane %v1854, 2
        %v1908 = vsel %vm1214, %v1905, %v1907
        %v1909 = vrot.slane %v1855, 2
        %v1910 = vrot.slane %v1856, 2
        %v1911 = vsel %vm1214, %v1909, %v1910
        %v1912 = vrot.slane %v1857, 2
        %v1913 = vsel %vm1214, %v1910, %v1912
        %v1914 = vrot.slane %v1858, 2
        %v1915 = vrot.slane %v1859, 2
        %v1916 = vsel %vm1214, %v1914, %v1915
        %v1917 = vrot.slane %v1860, 2
        %v1918 = vsel %vm1214, %v1915, %v1917
        %v1919 = vrot.slane %v1861, 2
        %v1920 = vrot.slane %v1862, 2
        %v1921 = vsel %vm1214, %v1919, %v1920
        %v1922 = vrot.slane %v1863, 2
        %v1923 = vsel %vm1214, %v1920, %v1922
        %v1924 = vrot.slane %v1864, 2
        %v1925 = vrot.slane %v1865, 2
        %v1926 = vsel %vm1214, %v1924, %v1925
        %v1927 = vrot.slane %v1866, 2
        %v1928 = vsel %vm1214, %v1925, %v1927
        %v1929 = vrot.slane %v1867, 2
        %v1930 = vrot.slane %v1868, 2
        %v1931 = vsel %vm1214, %v1929, %v1930
        %v1932 = vrot.slane %v1869, 2
        %v1933 = vsel %vm1214, %v1930, %v1932
        %v1950 = vadd.f32 %v1813, %v1896
        %v1951 = vadd.f32 %v1814, %v1898
        %v1952 = vadd.f32 %v1815, %v1901
        %v1953 = vadd.f32 %v1816, %v1903
        %v1954 = vadd.f32 %v1817, %v1906
        %v1955 = vadd.f32 %v1818, %v1908
        %v1956 = vadd.f32 %v1819, %v1911
        %v1957 = vadd.f32 %v1820, %v1913
        %v1958 = vadd.f32 %v1821, %v1916
        %v1959 = vadd.f32 %v1822, %v1918
        %v1960 = vadd.f32 %v1823, %v1921
        %v1961 = vadd.f32 %v1824, %v1923
        %v1962 = vadd.f32 %v1825, %v1926
        %v1963 = vadd.f32 %v1826, %v1928
        %v1964 = vadd.f32 %v1827, %v1931
        %v1965 = vadd.f32 %v1828, %v1933
        %v1966 = vld [vmem:[%s4] sm:$0x1]
        %v1968 = vperm.slane %v1966, 0
        %v1970 = vadd.f32 %v1950, %v1968
        %v1971 = vadd.f32 %v1951, %v1968
        %v1972 = vadd.f32 %v1952, %v1968
        %v1973 = vadd.f32 %v1953, %v1968
        %v1974 = vadd.f32 %v1954, %v1968
        %v1975 = vadd.f32 %v1955, %v1968
        %v1976 = vadd.f32 %v1956, %v1968
        %v1977 = vadd.f32 %v1957, %v1968
        %v1978 = vadd.f32 %v1958, %v1968
        %v1979 = vadd.f32 %v1959, %v1968
        %v1980 = vadd.f32 %v1960, %v1968
        %v1981 = vadd.f32 %v1961, %v1968
        %v1982 = vadd.f32 %v1962, %v1968
        %v1983 = vadd.f32 %v1963, %v1968
        %v1984 = vadd.f32 %v1964, %v1968
        %v1985 = vadd.f32 %v1965, %v1968
        %v1986 = vmax.f32 %v1970, 0.0
        %v1987 = vmax.f32 %v1971, 0.0
        %v1988 = vmax.f32 %v1972, 0.0
        %v1989 = vmax.f32 %v1973, 0.0
        %v1990 = vmax.f32 %v1974, 0.0
        %v1991 = vmax.f32 %v1975, 0.0
        %v1992 = vmax.f32 %v1976, 0.0
        %v1993 = vmax.f32 %v1977, 0.0
        %v1994 = vmax.f32 %v1978, 0.0
        %v1995 = vmax.f32 %v1979, 0.0
        %v1996 = vmax.f32 %v1980, 0.0
        %v1997 = vmax.f32 %v1981, 0.0
        %v1998 = vmax.f32 %v1982, 0.0
        %v1999 = vmax.f32 %v1983, 0.0
        %v2000 = vmax.f32 %v1984, 0.0
        %v2001 = vmax.f32 %v1985, 0.0
        %v2002 = vmin.f32 %v1986, 6.0
        %v2003 = vmin.f32 %v1987, 6.0
        %v2004 = vmin.f32 %v1988, 6.0
        %v2005 = vmin.f32 %v1989, 6.0
        %v2006 = vmin.f32 %v1990, 6.0
        %v2007 = vmin.f32 %v1991, 6.0
        %v2008 = vmin.f32 %v1992, 6.0
        %v2009 = vmin.f32 %v1993, 6.0
        %v2010 = vmin.f32 %v1994, 6.0
        %v2011 = vmin.f32 %v1995, 6.0
        %v2012 = vmin.f32 %v1996, 6.0
        %v2013 = vmin.f32 %v1997, 6.0
        %v2014 = vmin.f32 %v1998, 6.0
        %v2015 = vmin.f32 %v1999, 6.0
        %v2016 = vmin.f32 %v2000, 6.0
        %v2017 = vmin.f32 %v2001, 6.0
        %v2018 = vpack.c.bf16 %v2003, %v2002
        %v2019 = vpack.c.bf16 %v2005, %v2004
        %v2020 = vpack.c.bf16 %v2007, %v2006
        %v2021 = vpack.c.bf16 %v2009, %v2008
        %v2022 = vpack.c.bf16 %v2011, %v2010
        %v2023 = vpack.c.bf16 %v2013, %v2012
        %v2024 = vpack.c.bf16 %v2015, %v2014
        %v2025 = vpack.c.bf16 %v2017, %v2016
        %v2026 = vld [vmem:[%s5] sm:$0xf]
        %v2027 = vld [vmem:[%s5 + $0x4] sm:$0xf]
        %v2028 = vld [vmem:[%s5 + $0x8] sm:$0xf]
        %v2029 = vld [vmem:[%s5 + $0xc] sm:$0xf]
        %v2030 = vld [vmem:[%s6] sm:$0x1]
        %v2032 = vperm.slane %v2030, 0
        %v2038 = vunpack.c.l.b16 %v2026
        %v2039 = vunpack.c.l.b16 %v2027
        %v2040 = vunpack.c.l.b16 %v2028
        %v2041 = vunpack.c.l.b16 %v2029
        %v2042 = vpack.c.b16 %v2039, %v2038
        %v2043 = vpack.c.b16 %v2041, %v2040
        %vm2046 = vcmask 261120
        %v2048 = vsel %vm2046, %v2018, 0
        %v2051 = vsel %vm2046, %v2019, 0
        %v2054 = vsel %vm2046, %v2020, 0
        %v2057 = vsel %vm2046, %v2021, 0
        %v2060 = vsel %vm2046, %v2022, 0
        %v2063 = vsel %vm2046, %v2023, 0
        %v2066 = vsel %vm2046, %v2024, 0
        %v2069 = vsel %vm2046, %v2025, 0
        %2071 = vmatpush.bf16.msra.mxu0 0
        %2072 = vmatpush.bf16.msra.mxu0 0
        %2073 = vmatpush.bf16.msra.mxu0 0
        %2074 = vmatpush.bf16.msra.mxu0 0
        %2075 = vmatpush.bf16.msra.mxu0 0
        %2076 = vmatpush.bf16.msra.mxu0 0
        %2077 = vmatpush.bf16.msra.mxu0 %v2043
        %2078 = vmatpush.bf16.msra.mxu0 %v2042
        %2079 = vmatmul.bf16.gmra.mxu0 %v2048
        %v2080 = vpop.f32.mrf.mxu0
        %v2081 = vadd.f32 %v2032, %v2080
        %v2082 = vpop.f32.mrf.mxu0
        %v2083 = vadd.f32 %v2032, %v2082
        %2084 = vmatmul.bf16.gmra.mxu0 %v2051
        %v2085 = vpop.f32.mrf.mxu0
        %v2086 = vadd.f32 %v2032, %v2085
        %v2087 = vpop.f32.mrf.mxu0
        %v2088 = vadd.f32 %v2032, %v2087
        %2089 = vmatmul.bf16.gmra.mxu0 %v2054
        %v2090 = vpop.f32.mrf.mxu0
        %v2091 = vadd.f32 %v2032, %v2090
        %v2092 = vpop.f32.mrf.mxu0
        %v2093 = vadd.f32 %v2032, %v2092
        %2094 = vmatmul.bf16.gmra.mxu0 %v2057
        %v2095 = vpop.f32.mrf.mxu0
        %v2096 = vadd.f32 %v2032, %v2095
        %v2097 = vpop.f32.mrf.mxu0
        %v2098 = vadd.f32 %v2032, %v2097
        %2099 = vmatmul.bf16.gmra.mxu0 %v2060
        %v2100 = vpop.f32.mrf.mxu0
        %v2101 = vadd.f32 %v2032, %v2100
        %v2102 = vpop.f32.mrf.mxu0
        %v2103 = vadd.f32 %v2032, %v2102
        %2104 = vmatmul.bf16.gmra.mxu0 %v2063
        %v2105 = vpop.f32.mrf.mxu0
        %v2106 = vadd.f32 %v2032, %v2105
        %v2107 = vpop.f32.mrf.mxu0
        %v2108 = vadd.f32 %v2032, %v2107
        %2109 = vmatmul.bf16.gmra.mxu0 %v2066
        %v2110 = vpop.f32.mrf.mxu0
        %v2111 = vadd.f32 %v2032, %v2110
        %v2112 = vpop.f32.mrf.mxu0
        %v2113 = vadd.f32 %v2032, %v2112
        %2114 = vmatmul.bf16.gmra.mxu0 %v2069
        %v2115 = vpop.f32.mrf.mxu0
        %v2116 = vadd.f32 %v2032, %v2115
        %v2117 = vpop.f32.mrf.mxu0
        %v2118 = vadd.f32 %v2032, %v2117
        %2119 = vdwg.mxu0
        %v2120 = vunpack.c.l.bf16 %v362
        %v2121 = vunpack.c.l.bf16 %v363
        %v2122 = vunpack.c.l.bf16 %v364
        %v2123 = vunpack.c.l.bf16 %v365
        %v2124 = vunpack.c.l.bf16 %v366
        %v2125 = vunpack.c.l.bf16 %v367
        %v2126 = vunpack.c.l.bf16 %v368
        %v2127 = vunpack.c.l.bf16 %v369
        %v2128 = vunpack.c.l.bf16 %v370
        %v2129 = vunpack.c.l.bf16 %v371
        %v2130 = vunpack.c.l.bf16 %v372
        %v2131 = vunpack.c.l.bf16 %v373
        %v2132 = vunpack.c.l.bf16 %v374
        %v2133 = vunpack.c.l.bf16 %v375
        %v2134 = vunpack.c.l.bf16 %v376
        %v2135 = vunpack.c.l.bf16 %v377
        %v2136 = vadd.f32 %v2081, %v2120
        %v2137 = vadd.f32 %v2083, %v2121
        %v2138 = vadd.f32 %v2086, %v2122
        %v2139 = vadd.f32 %v2088, %v2123
        %v2140 = vadd.f32 %v2091, %v2124
        %v2141 = vadd.f32 %v2093, %v2125
        %v2142 = vadd.f32 %v2096, %v2126
        %v2143 = vadd.f32 %v2098, %v2127
        %v2144 = vadd.f32 %v2101, %v2128
        %v2145 = vadd.f32 %v2103, %v2129
        %v2146 = vadd.f32 %v2106, %v2130
        %v2147 = vadd.f32 %v2108, %v2131
        %v2148 = vadd.f32 %v2111, %v2132
        %v2149 = vadd.f32 %v2113, %v2133
        %v2150 = vadd.f32 %v2116, %v2134
        %v2151 = vadd.f32 %v2118, %v2135
        %2152 = vxpose.xlu0.b32.start [1/16] %v2136, 128
        %2153 = vxpose.xlu0.b32.cont [2/16] %v2137, 128
        %2154 = vxpose.xlu0.b32.cont [3/16] %v2138, 128
        %2155 = vxpose.xlu0.b32.cont [4/16] %v2139, 128
        %2156 = vxpose.xlu0.b32.cont [5/16] %v2140, 128
        %2157 = vxpose.xlu0.b32.cont [6/16] %v2141, 128
        %2158 = vxpose.xlu0.b32.cont [7/16] %v2142, 128
        %2159 = vxpose.xlu0.b32.cont [8/16] %v2143, 128
        %2160 = vxpose.xlu0.b32.cont [9/16] %v2144, 128
        %2161 = vxpose.xlu0.b32.cont [10/16] %v2145, 128
        %2162 = vxpose.xlu0.b32.cont [11/16] %v2146, 128
        %2163 = vxpose.xlu0.b32.cont [12/16] %v2147, 128
        %2164 = vxpose.xlu0.b32.cont [13/16] %v2148, 128
        %2165 = vxpose.xlu0.b32.cont [14/16] %v2149, 128
        %2166 = vxpose.xlu0.b32.cont [15/16] %v2150, 128
        %2167 = vxpose.xlu0.b32.end [16/16] %v2151, 128
        %v2168 = vpop.trf.xlu0
        %v2169 = vpop.trf.xlu0
        %v2170 = vpop.trf.xlu0
        %v2171 = vpop.trf.xlu0
        %v2172 = vpop.trf.xlu0
        %v2173 = vpop.trf.xlu0
        %v2174 = vpop.trf.xlu0
        %v2175 = vpop.trf.xlu0
        %v2176 = vpop.trf.xlu0
        %v2177 = vpop.trf.xlu0
        %v2178 = vpop.trf.xlu0
        %v2179 = vpop.trf.xlu0
        %v2180 = vpop.trf.xlu0
        %v2181 = vpop.trf.xlu0
        %v2182 = vpop.trf.xlu0
        %v2183 = vpop.trf.xlu0
        %2184 = vst [vmem:[%s285] sm:$0xff] %v2168
        %s2185 = sand.u32 %s195, 1
        %s2186 = scalar_lea.sflag [#allocation4], %s2185
        %s2187 = sand.u32 %s195, 1
        %s2188 = smul.addr %s2187, 8
        %s2189 = scalar_lea.vmem [#allocation3], %s2188
        // Predicated region
        $region65: #{tpu_custom_call.1} parent=47 // pred_check
          %p2190 = pneg %p205
        $region66: #{tpu_custom_call.1} parent=47 // pred_check_branch
          %2192 = sbr.rel (%p2190) target = $region68
        $region67: #{tpu_custom_call.1} parent=47 // pred_region
          %2194 = vsyncadd %s2186, 0
          %s2195 = smul.addr %s25, 2
          %s2196 = sadd.s32 %s26, %s2195
          %s2197 = smul.addr %s2196, 8
          %s2198 = scalar_lea.hbm %s7, %s2197
          %s2200 = sshll.u32 %s2189, 4
          %s2201 = int_to_ptr.vmem [resolvable:$true] %s2200
          %s2202 = sshll.u32 %s2198, 4
          %s2203 = int_to_ptr.hbm [resolvable:$true] %s2202
          %2205 = dma.vmem_to_hbm [thread:$0]  %s2201, 128, %s2203, %s2186
        $region68: #{tpu_custom_call.1} parent=47 // pred_fallthru
          _
      $region48: #{tpu_custom_call.1} parent=5 // pred_fallthru
        _
      %p2206 = scmp.le.s32.totalorder 2, %s16
      // Predicated region
      $region69: #{tpu_custom_call.1} parent=5 // pred_check
        %p2207 = pneg %p2206
      $region70: #{tpu_custom_call.1} parent=5 // pred_check_branch
        %2209 = sbr.rel (%p2207) target = $region72
      $region71: #{tpu_custom_call.1} parent=5 // pred_region
        %s2210 = ssub.s32 %s16, 2
        // Predicated region
        $region73: #{tpu_custom_call.1} parent=71 // pred_check
          %p2211 = pneg %p211
        $region74: #{tpu_custom_call.1} parent=71 // pred_check_branch
          %2213 = sbr.rel (%p2211) target = $region76
        $region75: #{tpu_custom_call.1} parent=71 // pred_region
          %s2214 = sand.u32 %s196, 1
          %s2215 = scalar_lea.sflag [#allocation4], %s2214
          %s2216 = sand.u32 %s196, 1
          %s2217 = smul.addr %s2216, 8
          %s2218 = scalar_lea.vmem [#allocation3], %s2217
          %2220 = dma.done %s2215, 128
        $region76: #{tpu_custom_call.1} parent=71 // pred_fallthru
          _
      $region72: #{tpu_custom_call.1} parent=5 // pred_fallthru
        _
    $region6: #{tpu_custom_call.1} parent=1 // loop_footer
      %s20 = sadd.s32 1, %s16
    $region7: #{tpu_custom_call.1} parent=1 // loop_footer_branch
      %15 = sbr.rel target = $region3
    $region8: #{tpu_custom_call.1} parent=1 // loop_exit
      _
    %2221 = vsyncpa [#allocation4], 1
    %s2222 = scalar_lea.sflag [#allocation4], 1
    %2223 = vsyncpa %s2222, 1

</llo_original>
